<compile_context>
chip_gen: v5e
topology: v5e:2x2
jax: 0.10.0
libtpu: 0.0.40
codegen_flags: <defaults>
</compile_context>

<pallas_src>
import jax
import jax.numpy as jnp
from jax.experimental import pallas as pl
from jax.experimental.pallas import tpu as pltpu

BN_EPS = 1e-5                      # PyTorch BatchNorm3d default eps
COMPUTE_DTYPE = jnp.bfloat16       # matmul-input dtype (fp32 accumulation)
VMEM_LIMIT_BYTES = 32 * 1024 * 1024


# ------------------------------ tiling helpers ------------------------------ #

def _round_up(x, m):
    return ((x + m - 1) // m) * m


def _choose_lane_tile(n_cols, col_bytes, *, target=2048,
                      vmem_budget=6 * 1024 * 1024):
    """Lane-tile (multiple of 128): as large as fits a conservative double-buffered
    VMEM budget; split into >=8 grid steps only for big problems (megacore)."""
    tl = target
    while tl > 128 and 2 * tl * col_bytes > vmem_budget:
        tl //= 2
    if n_cols >= 8 * 1024 and n_cols < 8 * tl:
        tl = max(128, _round_up(pl.cdiv(n_cols, 8), 128))
    tl = max(128, min(tl, _round_up(n_cols, 128)))
    return tl


# ----------------------------- Pallas kernels ------------------------------ #

def _bn_relu6_kernel(x_ref, scale_ref, shift_ref, o_ref):
    """y = clip(x * scale + shift, 0, 6); scale/shift are per-channel (rows)."""
    y = x_ref[...].astype(jnp.float32) * scale_ref[...] + shift_ref[...]
    o_ref[...] = jnp.clip(y, 0.0, 6.0).astype(o_ref.dtype)


def _make_conv_kernel(has_res, has_bn, dual):
    """Conv-as-single-matmul kernel: acc(Cout, tl) = W(Cout,K) @ P(K,tl) + bias,
    optional fused residual add and fused BatchNorm+ReLU6 epilogue.
    `dual` additionally emits the raw (pre-BN) fp32 output (identity shortcut)."""

    def kernel(*refs):
        p_ref, w_ref, b_ref = refs[0], refs[1], refs[2]
        i = 3
        if has_res:
            r_ref = refs[i]
            i += 1
        if has_bn:
            g_ref, be_ref, mn_ref, vr_ref = refs[i:i + 4]
            i += 4

        acc = jnp.dot(w_ref[...], p_ref[...],
                      preferred_element_type=jnp.float32)          # (Cout, tl)
        acc = acc + b_ref[...]
        if has_res:
            acc = acc + r_ref[...].astype(jnp.float32)

        if has_bn:
            inv = jax.lax.rsqrt(vr_ref[...] + BN_EPS)
            act = jnp.clip((acc - mn_ref[...]) * (g_ref[...] * inv) + be_ref[...],
                           0.0, 6.0)

        if dual:
            raw_ref, act_ref = refs[i], refs[i + 1]
            raw_ref[...] = acc.astype(raw_ref.dtype)
            act_ref[...] = act.astype(act_ref.dtype)
        elif has_bn:
            out_ref = refs[i]
            out_ref[...] = act.astype(out_ref.dtype)
        else:
            out_ref = refs[i]
            out_ref[...] = acc.astype(out_ref.dtype)

    return kernel


# ------------------------------ op wrappers -------------------------------- #

def bn_relu6(x_cndhw, gamma, beta, mean, var, out_dtype=COMPUTE_DTYPE):
    """Standalone fused BatchNorm3d(running stats) + ReLU6 on (C, N, D, H, W)."""
    C = x_cndhw.shape[0]
    S = int(x_cndhw.size) // C
    scale = (gamma * jax.lax.rsqrt(var + BN_EPS)).astype(jnp.float32).reshape(C, 1)
    shift = beta.astype(jnp.float32).reshape(C, 1) - mean.astype(jnp.float32).reshape(C, 1) * scale

    xf = x_cndhw.reshape(C, S)
    col_bytes = C * (x_cndhw.dtype.itemsize + jnp.dtype(out_dtype).itemsize)
    tl = _choose_lane_tile(S, col_bytes, target=4096)
    Sp = _round_up(S, tl)
    if Sp != S:
        xf = jnp.pad(xf, ((0, 0), (0, Sp - S)))

    out = pl.pallas_call(
        _bn_relu6_kernel,
        out_shape=jax.ShapeDtypeStruct((C, Sp), out_dtype),
        grid_spec=pltpu.PrefetchScalarGridSpec(
            num_scalar_prefetch=0,
            grid=(Sp // tl,),
            in_specs=[pl.BlockSpec((C, tl), lambda i: (0, i)),
                      pl.BlockSpec((C, 1), lambda i: (0, 0)),
                      pl.BlockSpec((C, 1), lambda i: (0, 0))],
            out_specs=pl.BlockSpec((C, tl), lambda i: (0, i)),
        ),
        compiler_params=pltpu.CompilerParams(
            dimension_semantics=("parallel",),
            vmem_limit_bytes=VMEM_LIMIT_BYTES),
    )(xf, scale, shift)
    return out[:, :S].reshape(x_cndhw.shape)


def conv3d(x_cndhw, w_oikkk, bias, stride, padding, *,
           residual=None, bn=None, dual=False, act_dtype=COMPUTE_DTYPE):
    """Conv3d (cube kernel, symmetric padding) as ONE Pallas matmul per lane-tile.

    Input/output layout: (C, N, D, H, W) -- channels on sublanes, spatial on lanes.
    residual : optional (Cout, N, Do, Ho, Wo) tensor fused-added to the conv output.
    bn       : optional (gamma, beta, mean, var) -> fused BatchNorm+ReLU6 epilogue
               (applied AFTER the residual add, matching the next block's bn_relu1).
    dual     : if True (requires bn), returns (raw_fp32, activated) tensors.
    """
    Cin, N, D, H, W = x_cndhw.shape
    Cout, _, kD, kH, kW = w_oikkk.shape
    xp = x_cndhw
    if padding:
        p = padding
        xp = jnp.pad(x_cndhw, ((0, 0), (0, 0), (p, p), (p, p), (p, p)))
    Do = (D + 2 * padding - kD) // stride + 1
    Ho = (H + 2 * padding - kH) // stride + 1
    Wo = (W + 2 * padding - kW) // stride + 1
    M = N * Do * Ho * Wo
    K = kD * kH * kW * Cin

    # glue: im2col with ALL taps folded into the contraction dim -> (K, M)
    cols = []
    for kd in range(kD):
        for kh in range(kH):
            for kw in range(kW):
                sl = xp[:, :, kd:kd + (Do - 1) * stride + 1:stride,
                              kh:kh + (Ho - 1) * stride + 1:stride,
                              kw:kw + (Wo - 1) * stride + 1:stride]
                cols.append(sl.reshape(Cin, M))
    patches = cols[0] if len(cols) == 1 else jnp.concatenate(cols, axis=0)
    patches = patches.astype(COMPUTE_DTYPE)                                 # (K, M)
    wmat = jnp.transpose(w_oikkk, (0, 2, 3, 4, 1)).reshape(Cout, K)
    wmat = wmat.astype(COMPUTE_DTYPE)                                       # (Cout, K)

    has_res = residual is not None
    has_bn = bn is not None
    assert not dual or has_bn

    col_bytes = (K * jnp.dtype(COMPUTE_DTYPE).itemsize
                 + Cout * 4 * (1 + int(has_res) + int(dual)))
    tl = _choose_lane_tile(M, col_bytes)
    Mp = _round_up(M, tl)

    def pad_cols(a):
        return a if Mp == M else jnp.pad(a, ((0, 0), (0, Mp - M)))

    inputs = [pad_cols(patches), wmat, bias.astype(jnp.float32).reshape(Cout, 1)]
    in_specs = [pl.BlockSpec((K, tl), lambda i: (0, i)),
                pl.BlockSpec((Cout, K), lambda i: (0, 0)),
                pl.BlockSpec((Cout, 1), lambda i: (0, 0))]
    if has_res:
        inputs.append(pad_cols(residual.astype(jnp.float32).reshape(Cout, M)))
        in_specs.append(pl.BlockSpec((Cout, tl), lambda i: (0, i)))
    if has_bn:
        for p_ in bn:  # gamma, beta, running_mean, running_var
            inputs.append(p_.astype(jnp.float32).reshape(Cout, 1))
            in_specs.append(pl.BlockSpec((Cout, 1), lambda i: (0, 0)))

    col_spec = pl.BlockSpec((Cout, tl), lambda i: (0, i))
    if dual:
        out_shape = (jax.ShapeDtypeStruct((Cout, Mp), jnp.float32),
                     jax.ShapeDtypeStruct((Cout, Mp), act_dtype))
        out_specs = (col_spec, col_spec)
    elif has_bn:
        out_shape = jax.ShapeDtypeStruct((Cout, Mp), act_dtype)
        out_specs = col_spec
    else:
        out_shape = jax.ShapeDtypeStruct((Cout, Mp), jnp.float32)
        out_specs = col_spec

    result = pl.pallas_call(
        _make_conv_kernel(has_res, has_bn, dual),
        out_shape=out_shape,
        grid_spec=pltpu.PrefetchScalarGridSpec(
            num_scalar_prefetch=0,
            grid=(Mp // tl,),
            in_specs=in_specs,
            out_specs=out_specs,
        ),
        compiler_params=pltpu.CompilerParams(
            dimension_semantics=("parallel",),
            vmem_limit_bytes=VMEM_LIMIT_BYTES),
    )(*inputs)

    def unflatten(a):
        return a[:, :M].reshape(Cout, N, Do, Ho, Wo)

    if dual:
        return unflatten(result[0]), unflatten(result[1])
    return unflatten(result)


# --------------------------- parameter creation ----------------------------- #

def _init_conv(key, cout, cin, k):
    wkey, bkey = jax.random.split(key)
    fan_in = cin * k * k * k
    bound = 1.0 / (fan_in ** 0.5)
    w = jax.random.uniform(wkey, (cout, cin, k, k, k), jnp.float32, -bound, bound)
    b = jax.random.uniform(bkey, (cout,), jnp.float32, -bound, bound)
    return w, b


def _init_bn(key, c):
    k1, k2, k3, k4 = jax.random.split(key, 4)
    gamma = 1.0 + 0.1 * jax.random.normal(k1, (c,), jnp.float32)
    beta = 0.1 * jax.random.normal(k2, (c,), jnp.float32)
    mean = 0.1 * jax.random.normal(k3, (c,), jnp.float32)
    var = 1.0 + 0.1 * jax.random.uniform(k4, (c,), jnp.float32)
    return gamma, beta, mean, var


def init_encoding_block_layer(key, in_channels, out_channels, stride):
    ks = jax.random.split(key, 9)
    p = {}
    p['proj_w'], p['proj_b'] = _init_conv(ks[0], out_channels, in_channels, 1)
    # residual block 1
    p['rb1_bn1'] = _init_bn(ks[1], in_channels)
    p['rb1_conv1_w'], p['rb1_conv1_b'] = _init_conv(ks[2], out_channels, in_channels, 3)
    p['rb1_bn2'] = _init_bn(ks[3], out_channels)
    p['rb1_conv2_w'], p['rb1_conv2_b'] = _init_conv(ks[4], out_channels, out_channels, 3)
    # residual block 2
    p['rb2_bn1'] = _init_bn(ks[5], out_channels)
    p['rb2_conv1_w'], p['rb2_conv1_b'] = _init_conv(ks[6], out_channels, out_channels, 3)
    p['rb2_bn2'] = _init_bn(ks[7], out_channels)
    p['rb2_conv2_w'], p['rb2_conv2_b'] = _init_conv(ks[8], out_channels, out_channels, 3)
    p['stride'] = stride
    return p


# ------------------------------ forward pass -------------------------------- #

def encoding_block_layer(params, x_ncdhw):
    stride = params['stride']
    x = jnp.transpose(x_ncdhw, (1, 0, 2, 3, 4))  # NCDHW -> (C, N, D, H, W) fp32

    # --- residual block 1 (projection shortcut: 1x1x1 conv, stride) ---
    shortcut = conv3d(x, params['proj_w'], params['proj_b'], stride, 0)
    a0 = bn_relu6(x, *params['rb1_bn1'])                               # standalone BN (layer input)
    h1 = conv3d(a0, params['rb1_conv1_w'], params['rb1_conv1_b'], stride, 1,
                bn=params['rb1_bn2'])                                  # conv + fused BN/ReLU6 epilogue
    # conv2 + shortcut add fused; rb2's bn_relu1 fused too; raw x1 kept for rb2's identity shortcut
    x1, a1 = conv3d(h1, params['rb1_conv2_w'], params['rb1_conv2_b'], 1, 1,
                    residual=shortcut, bn=params['rb2_bn1'], dual=True)

    # --- residual block 2 (identity shortcut) ---
    h2 = conv3d(a1, params['rb2_conv1_w'], params['rb2_conv1_b'], 1, 1,
                bn=params['rb2_bn2'])                                  # conv + fused BN/ReLU6 epilogue
    x2 = conv3d(h2, params['rb2_conv2_w'], params['rb2_conv2_b'], 1, 1,
                residual=x1)                                           # conv + fused residual add

    return jnp.transpose(x2, (1, 0, 2, 3, 4))  # (C, N, ...) -> NCDHW


# ---------------------------------- main ------------------------------------ #

if __name__ == "__main__":
    in_channels, out_channels, stride, blocks = 4, 8, 2, 2
    N, D, H, W = 2, 8, 8, 8

    key = jax.random.PRNGKey(0)
    pkey, xkey = jax.random.split(key)
    params = init_encoding_block_layer(pkey, in_channels, out_channels, stride)
    x = jax.random.normal(xkey, (N, in_channels, D, H, W), jnp.float32)  # NCDHW

    fwd = jax.jit(lambda xx: encoding_block_layer(params, xx))
    out = fwd(x)
    jax.block_until_ready(out)

    expected = (N, out_channels, D // stride, H // stride, W // stride)
    assert out.shape == expected, (out.shape, expected)
    assert out.dtype == jnp.float32
    assert bool(jnp.all(jnp.isfinite(out)))
    print("KERNEL_OK")
</pallas_src>

<mosaic_0001>
module attributes {stable_mosaic.version = 11 : i64} {
  func.func @kernel(%arg0: i32, %arg1: memref<4x128xbf16, #tpu.memory_space<vmem>>, %arg2: memref<8x4xbf16, #tpu.memory_space<vmem>>, %arg3: memref<8x1xf32, #tpu.memory_space<vmem>>, %arg4: memref<8x128xf32, #tpu.memory_space<vmem>>) attributes {dimension_semantics = [#tpu.dimension_semantics<parallel>], iteration_bounds = array<i64: 1>, scalar_prefetch = 0 : i64, scratch_operands = 0 : i64, tpu.core_type = #tpu.core_type<tc>, window_params = [{transform_indices = @transform_0, window_bounds = array<i64: 4, 128>}, {pipeline_mode = #tpu.pipeline_mode<synchronous>, transform_indices = @transform_1, window_bounds = array<i64: 8, 4>}, {pipeline_mode = #tpu.pipeline_mode<synchronous>, transform_indices = @transform_2, window_bounds = array<i64: 8, 1>}, {transform_indices = @transform_3, window_bounds = array<i64: 8, 128>}]} {
    %c0 = arith.constant 0 : index
    %c0_0 = arith.constant 0 : index
    %0 = vector.load %arg2[%c0, %c0_0] : memref<8x4xbf16, #tpu.memory_space<vmem>>, vector<8x4xbf16>
    %c0_1 = arith.constant 0 : index
    %c0_2 = arith.constant 0 : index
    %1 = vector.load %arg1[%c0_1, %c0_2] : memref<4x128xbf16, #tpu.memory_space<vmem>>, vector<4x128xbf16>
    %cst = arith.constant dense<0.000000e+00> : vector<8x128xf32>
    %2 = tpu.matmul %0, %1, %cst {dimension_numbers = #tpu.dot_dimension_numbers<[1], [0], [0], [1], [0, 0, 1, 1], [], []>} : vector<8x4xbf16>, vector<4x128xbf16>, vector<8x128xf32> -> vector<8x128xf32>
    %c0_3 = arith.constant 0 : index
    %c0_4 = arith.constant 0 : index
    %3 = vector.load %arg3[%c0_3, %c0_4] : memref<8x1xf32, #tpu.memory_space<vmem>>, vector<8x1xf32>
    %4 = vector.broadcast %3 : vector<8x1xf32> to vector<8x128xf32>
    %5 = arith.addf %2, %4 : vector<8x128xf32>
    %c0_5 = arith.constant 0 : index
    %c0_6 = arith.constant 0 : index
    %6 = vector.load %arg4[%c0_5, %c0_6] : memref<8x128xf32, #tpu.memory_space<vmem>>, vector<8x128xf32>
    tpu.vector_store %arg4[%c0_5, %c0_6], %5 {strides = array<i32>} : memref<8x128xf32, #tpu.memory_space<vmem>>, vector<8x128xf32>,
    return
  }
  func.func @transform_0(%arg0: i32) -> (i32, i32) {
    %c0_i32 = arith.constant 0 : i32
    %c0_i32_0 = arith.constant 0 : i32
    return %c0_i32, %arg0 : i32, i32
  }
  func.func @transform_1(%arg0: i32) -> (i32, i32) {
    %c0_i32 = arith.constant 0 : i32
    %c0_i32_0 = arith.constant 0 : i32
    %c0_i32_1 = arith.constant 0 : i32
    return %c0_i32, %c0_i32_0 : i32, i32
  }
  func.func @transform_2(%arg0: i32) -> (i32, i32) {
    %c0_i32 = arith.constant 0 : i32
    %c0_i32_0 = arith.constant 0 : i32
    %c0_i32_1 = arith.constant 0 : i32
    return %c0_i32, %c0_i32_0 : i32, i32
  }
  func.func @transform_3(%arg0: i32) -> (i32, i32) {
    %c0_i32 = arith.constant 0 : i32
    %c0_i32_0 = arith.constant 0 : i32
    return %c0_i32, %arg0 : i32, i32
  }
}

module attributes {stable_mosaic.version = 11 : i64} {
  func.func @_bn_relu6_kernel(%arg0: i32, %arg1: memref<4x1024xf32, #tpu.memory_space<vmem>>, %arg2: memref<4x1xf32, #tpu.memory_space<vmem>>, %arg3: memref<4x1xf32, #tpu.memory_space<vmem>>, %arg4: memref<4x1024xbf16, #tpu.memory_space<vmem>>) attributes {dimension_semantics = [#tpu.dimension_semantics<parallel>], iteration_bounds = array<i64: 1>, scalar_prefetch = 0 : i64, scratch_operands = 0 : i64, tpu.core_type = #tpu.core_type<tc>, window_params = [{transform_indices = @transform_0, window_bounds = array<i64: 4, 1024>}, {pipeline_mode = #tpu.pipeline_mode<synchronous>, transform_indices = @transform_1, window_bounds = array<i64: 4, 1>}, {pipeline_mode = #tpu.pipeline_mode<synchronous>, transform_indices = @transform_2, window_bounds = array<i64: 4, 1>}, {transform_indices = @transform_3, window_bounds = array<i64: 4, 1024>}]} {
    %c0 = arith.constant 0 : index
    %c0_0 = arith.constant 0 : index
    %0 = vector.load %arg1[%c0, %c0_0] : memref<4x1024xf32, #tpu.memory_space<vmem>>, vector<4x1024xf32>
    %c0_1 = arith.constant 0 : index
    %c0_2 = arith.constant 0 : index
    %1 = vector.load %arg2[%c0_1, %c0_2] : memref<4x1xf32, #tpu.memory_space<vmem>>, vector<4x1xf32>
    %2 = vector.broadcast %1 : vector<4x1xf32> to vector<4x1024xf32>
    %3 = arith.mulf %0, %2 : vector<4x1024xf32>
    %c0_3 = arith.constant 0 : index
    %c0_4 = arith.constant 0 : index
    %4 = vector.load %arg3[%c0_3, %c0_4] : memref<4x1xf32, #tpu.memory_space<vmem>>, vector<4x1xf32>
    %5 = vector.broadcast %4 : vector<4x1xf32> to vector<4x1024xf32>
    %6 = arith.addf %3, %5 : vector<4x1024xf32>
    %cst = arith.constant 0.000000e+00 : f32
    %cst_5 = arith.constant 6.000000e+00 : f32
    %7 = vector.broadcast %cst : f32 to vector<4x1024xf32>
    %8 = arith.maximumf %7, %6 : vector<4x1024xf32>
    %9 = vector.broadcast %cst_5 : f32 to vector<4x1024xf32>
    %10 = arith.minimumf %9, %8 : vector<4x1024xf32>
    %11 = arith.truncf %10 : vector<4x1024xf32> to vector<4x1024xbf16>
    %c0_6 = arith.constant 0 : index
    %c0_7 = arith.constant 0 : index
    %12 = vector.load %arg4[%c0_6, %c0_7] : memref<4x1024xbf16, #tpu.memory_space<vmem>>, vector<4x1024xbf16>
    tpu.vector_store %arg4[%c0_6, %c0_7], %11 {strides = array<i32>} : memref<4x1024xbf16, #tpu.memory_space<vmem>>, vector<4x1024xbf16>,
    return
  }
  func.func @transform_0(%arg0: i32) -> (i32, i32) {
    %c0_i32 = arith.constant 0 : i32
    %c0_i32_0 = arith.constant 0 : i32
    return %c0_i32, %arg0 : i32, i32
  }
  func.func @transform_1(%arg0: i32) -> (i32, i32) {
    %c0_i32 = arith.constant 0 : i32
    %c0_i32_0 = arith.constant 0 : i32
    %c0_i32_1 = arith.constant 0 : i32
    return %c0_i32, %c0_i32_0 : i32, i32
  }
  func.func @transform_2(%arg0: i32) -> (i32, i32) {
    %c0_i32 = arith.constant 0 : i32
    %c0_i32_0 = arith.constant 0 : i32
    %c0_i32_1 = arith.constant 0 : i32
    return %c0_i32, %c0_i32_0 : i32, i32
  }
  func.func @transform_3(%arg0: i32) -> (i32, i32) {
    %c0_i32 = arith.constant 0 : i32
    %c0_i32_0 = arith.constant 0 : i32
    return %c0_i32, %arg0 : i32, i32
  }
}

module attributes {stable_mosaic.version = 11 : i64} {
  func.func @kernel(%arg0: i32, %arg1: memref<108x128xbf16, #tpu.memory_space<vmem>>, %arg2: memref<8x108xbf16, #tpu.memory_space<vmem>>, %arg3: memref<8x1xf32, #tpu.memory_space<vmem>>, %arg4: memref<8x1xf32, #tpu.memory_space<vmem>>, %arg5: memref<8x1xf32, #tpu.memory_space<vmem>>, %arg6: memref<8x1xf32, #tpu.memory_space<vmem>>, %arg7: memref<8x1xf32, #tpu.memory_space<vmem>>, %arg8: memref<8x128xbf16, #tpu.memory_space<vmem>>) attributes {dimension_semantics = [#tpu.dimension_semantics<parallel>], iteration_bounds = array<i64: 1>, scalar_prefetch = 0 : i64, scratch_operands = 0 : i64, tpu.core_type = #tpu.core_type<tc>, window_params = [{transform_indices = @transform_0, window_bounds = array<i64: 108, 128>}, {pipeline_mode = #tpu.pipeline_mode<synchronous>, transform_indices = @transform_1, window_bounds = array<i64: 8, 108>}, {pipeline_mode = #tpu.pipeline_mode<synchronous>, transform_indices = @transform_2, window_bounds = array<i64: 8, 1>}, {pipeline_mode = #tpu.pipeline_mode<synchronous>, transform_indices = @transform_3, window_bounds = array<i64: 8, 1>}, {pipeline_mode = #tpu.pipeline_mode<synchronous>, transform_indices = @transform_4, window_bounds = array<i64: 8, 1>}, {pipeline_mode = #tpu.pipeline_mode<synchronous>, transform_indices = @transform_5, window_bounds = array<i64: 8, 1>}, {pipeline_mode = #tpu.pipeline_mode<synchronous>, transform_indices = @transform_6, window_bounds = array<i64: 8, 1>}, {transform_indices = @transform_7, window_bounds = array<i64: 8, 128>}]} {
    %c0 = arith.constant 0 : index
    %c0_0 = arith.constant 0 : index
    %0 = vector.load %arg2[%c0, %c0_0] : memref<8x108xbf16, #tpu.memory_space<vmem>>, vector<8x108xbf16>
    %c0_1 = arith.constant 0 : index
    %c0_2 = arith.constant 0 : index
    %1 = vector.load %arg1[%c0_1, %c0_2] : memref<108x128xbf16, #tpu.memory_space<vmem>>, vector<108x128xbf16>
    %cst = arith.constant dense<0.000000e+00> : vector<8x128xf32>
    %2 = tpu.matmul %0, %1, %cst {dimension_numbers = #tpu.dot_dimension_numbers<[1], [0], [0], [1], [0, 0, 1, 1], [], []>} : vector<8x108xbf16>, vector<108x128xbf16>, vector<8x128xf32> -> vector<8x128xf32>
    %c0_3 = arith.constant 0 : index
    %c0_4 = arith.constant 0 : index
    %3 = vector.load %arg3[%c0_3, %c0_4] : memref<8x1xf32, #tpu.memory_space<vmem>>, vector<8x1xf32>
    %4 = vector.broadcast %3 : vector<8x1xf32> to vector<8x128xf32>
    %5 = arith.addf %2, %4 : vector<8x128xf32>
    %c0_5 = arith.constant 0 : index
    %c0_6 = arith.constant 0 : index
    %6 = vector.load %arg7[%c0_5, %c0_6] : memref<8x1xf32, #tpu.memory_space<vmem>>, vector<8x1xf32>
    %cst_7 = arith.constant 9.99999974E-6 : f32
    %7 = vector.broadcast %cst_7 : f32 to vector<8x1xf32>
    %8 = arith.addf %6, %7 : vector<8x1xf32>
    %9 = math.rsqrt %8 : vector<8x1xf32>
    %c0_8 = arith.constant 0 : index
    %c0_9 = arith.constant 0 : index
    %10 = vector.load %arg6[%c0_8, %c0_9] : memref<8x1xf32, #tpu.memory_space<vmem>>, vector<8x1xf32>
    %11 = vector.broadcast %10 : vector<8x1xf32> to vector<8x128xf32>
    %12 = arith.subf %5, %11 : vector<8x128xf32>
    %c0_10 = arith.constant 0 : index
    %c0_11 = arith.constant 0 : index
    %13 = vector.load %arg4[%c0_10, %c0_11] : memref<8x1xf32, #tpu.memory_space<vmem>>, vector<8x1xf32>
    %14 = arith.mulf %13, %9 : vector<8x1xf32>
    %15 = vector.broadcast %14 : vector<8x1xf32> to vector<8x128xf32>
    %16 = arith.mulf %12, %15 : vector<8x128xf32>
    %c0_12 = arith.constant 0 : index
    %c0_13 = arith.constant 0 : index
    %17 = vector.load %arg5[%c0_12, %c0_13] : memref<8x1xf32, #tpu.memory_space<vmem>>, vector<8x1xf32>
    %18 = vector.broadcast %17 : vector<8x1xf32> to vector<8x128xf32>
    %19 = arith.addf %16, %18 : vector<8x128xf32>
    %cst_14 = arith.constant 0.000000e+00 : f32
    %cst_15 = arith.constant 6.000000e+00 : f32
    %20 = vector.broadcast %cst_14 : f32 to vector<8x128xf32>
    %21 = arith.maximumf %20, %19 : vector<8x128xf32>
    %22 = vector.broadcast %cst_15 : f32 to vector<8x128xf32>
    %23 = arith.minimumf %22, %21 : vector<8x128xf32>
    %24 = arith.truncf %23 : vector<8x128xf32> to vector<8x128xbf16>
    %c0_16 = arith.constant 0 : index
    %c0_17 = arith.constant 0 : index
    %25 = vector.load %arg8[%c0_16, %c0_17] : memref<8x128xbf16, #tpu.memory_space<vmem>>, vector<8x128xbf16>
    tpu.vector_store %arg8[%c0_16, %c0_17], %24 {strides = array<i32>} : memref<8x128xbf16, #tpu.memory_space<vmem>>, vector<8x128xbf16>,
    return
  }
  func.func @transform_0(%arg0: i32) -> (i32, i32) {
    %c0_i32 = arith.constant 0 : i32
    %c0_i32_0 = arith.constant 0 : i32
    return %c0_i32, %arg0 : i32, i32
  }
  func.func @transform_1(%arg0: i32) -> (i32, i32) {
    %c0_i32 = arith.constant 0 : i32
    %c0_i32_0 = arith.constant 0 : i32
    %c0_i32_1 = arith.constant 0 : i32
    return %c0_i32, %c0_i32_0 : i32, i32
  }
  func.func @transform_2(%arg0: i32) -> (i32, i32) {
    %c0_i32 = arith.constant 0 : i32
    %c0_i32_0 = arith.constant 0 : i32
    %c0_i32_1 = arith.constant 0 : i32
    return %c0_i32, %c0_i32_0 : i32, i32
  }
  func.func @transform_3(%arg0: i32) -> (i32, i32) {
    %c0_i32 = arith.constant 0 : i32
    %c0_i32_0 = arith.constant 0 : i32
    %c0_i32_1 = arith.constant 0 : i32
    return %c0_i32, %c0_i32_0 : i32, i32
  }
  func.func @transform_4(%arg0: i32) -> (i32, i32) {
    %c0_i32 = arith.constant 0 : i32
    %c0_i32_0 = arith.constant 0 : i32
    %c0_i32_1 = arith.constant 0 : i32
    return %c0_i32, %c0_i32_0 : i32, i32
  }
  func.func @transform_5(%arg0: i32) -> (i32, i32) {
    %c0_i32 = arith.constant 0 : i32
    %c0_i32_0 = arith.constant 0 : i32
    %c0_i32_1 = arith.constant 0 : i32
    return %c0_i32, %c0_i32_0 : i32, i32
  }
  func.func @transform_6(%arg0: i32) -> (i32, i32) {
    %c0_i32 = arith.constant 0 : i32
    %c0_i32_0 = arith.constant 0 : i32
    %c0_i32_1 = arith.constant 0 : i32
    return %c0_i32, %c0_i32_0 : i32, i32
  }
  func.func @transform_7(%arg0: i32) -> (i32, i32) {
    %c0_i32 = arith.constant 0 : i32
    %c0_i32_0 = arith.constant 0 : i32
    return %c0_i32, %arg0 : i32, i32
  }
}

module attributes {stable_mosaic.version = 11 : i64} {
  func.func @kernel(%arg0: i32, %arg1: memref<216x128xbf16, #tpu.memory_space<vmem>>, %arg2: memref<8x216xbf16, #tpu.memory_space<vmem>>, %arg3: memref<8x1xf32, #tpu.memory_space<vmem>>, %arg4: memref<8x128xf32, #tpu.memory_space<vmem>>, %arg5: memref<8x1xf32, #tpu.memory_space<vmem>>, %arg6: memref<8x1xf32, #tpu.memory_space<vmem>>, %arg7: memref<8x1xf32, #tpu.memory_space<vmem>>, %arg8: memref<8x1xf32, #tpu.memory_space<vmem>>, %arg9: memref<8x128xf32, #tpu.memory_space<vmem>>, %arg10: memref<8x128xbf16, #tpu.memory_space<vmem>>) attributes {dimension_semantics = [#tpu.dimension_semantics<parallel>], iteration_bounds = array<i64: 1>, scalar_prefetch = 0 : i64, scratch_operands = 0 : i64, tpu.core_type = #tpu.core_type<tc>, window_params = [{transform_indices = @transform_0, window_bounds = array<i64: 216, 128>}, {pipeline_mode = #tpu.pipeline_mode<synchronous>, transform_indices = @transform_1, window_bounds = array<i64: 8, 216>}, {pipeline_mode = #tpu.pipeline_mode<synchronous>, transform_indices = @transform_2, window_bounds = array<i64: 8, 1>}, {transform_indices = @transform_3, window_bounds = array<i64: 8, 128>}, {pipeline_mode = #tpu.pipeline_mode<synchronous>, transform_indices = @transform_4, window_bounds = array<i64: 8, 1>}, {pipeline_mode = #tpu.pipeline_mode<synchronous>, transform_indices = @transform_5, window_bounds = array<i64: 8, 1>}, {pipeline_mode = #tpu.pipeline_mode<synchronous>, transform_indices = @transform_6, window_bounds = array<i64: 8, 1>}, {pipeline_mode = #tpu.pipeline_mode<synchronous>, transform_indices = @transform_7, window_bounds = array<i64: 8, 1>}, {transform_indices = @transform_8, window_bounds = array<i64: 8, 128>}, {transform_indices = @transform_9, window_bounds = array<i64: 8, 128>}]} {
    %c0 = arith.constant 0 : index
    %c0_0 = arith.constant 0 : index
    %0 = vector.load %arg2[%c0, %c0_0] : memref<8x216xbf16, #tpu.memory_space<vmem>>, vector<8x216xbf16>
    %c0_1 = arith.constant 0 : index
    %c0_2 = arith.constant 0 : index
    %1 = vector.load %arg1[%c0_1, %c0_2] : memref<216x128xbf16, #tpu.memory_space<vmem>>, vector<216x128xbf16>
    %cst = arith.constant dense<0.000000e+00> : vector<8x128xf32>
    %2 = tpu.matmul %0, %1, %cst {dimension_numbers = #tpu.dot_dimension_numbers<[1], [0], [0], [1], [0, 0, 1, 1], [], []>} : vector<8x216xbf16>, vector<216x128xbf16>, vector<8x128xf32> -> vector<8x128xf32>
    %c0_3 = arith.constant 0 : index
    %c0_4 = arith.constant 0 : index
    %3 = vector.load %arg3[%c0_3, %c0_4] : memref<8x1xf32, #tpu.memory_space<vmem>>, vector<8x1xf32>
    %4 = vector.broadcast %3 : vector<8x1xf32> to vector<8x128xf32>
    %5 = arith.addf %2, %4 : vector<8x128xf32>
    %c0_5 = arith.constant 0 : index
    %c0_6 = arith.constant 0 : index
    %6 = vector.load %arg4[%c0_5, %c0_6] : memref<8x128xf32, #tpu.memory_space<vmem>>, vector<8x128xf32>
    %7 = arith.addf %5, %6 : vector<8x128xf32>
    %c0_7 = arith.constant 0 : index
    %c0_8 = arith.constant 0 : index
    %8 = vector.load %arg8[%c0_7, %c0_8] : memref<8x1xf32, #tpu.memory_space<vmem>>, vector<8x1xf32>
    %cst_9 = arith.constant 9.99999974E-6 : f32
    %9 = vector.broadcast %cst_9 : f32 to vector<8x1xf32>
    %10 = arith.addf %8, %9 : vector<8x1xf32>
    %11 = math.rsqrt %10 : vector<8x1xf32>
    %c0_10 = arith.constant 0 : index
    %c0_11 = arith.constant 0 : index
    %12 = vector.load %arg7[%c0_10, %c0_11] : memref<8x1xf32, #tpu.memory_space<vmem>>, vector<8x1xf32>
    %13 = vector.broadcast %12 : vector<8x1xf32> to vector<8x128xf32>
    %14 = arith.subf %7, %13 : vector<8x128xf32>
    %c0_12 = arith.constant 0 : index
    %c0_13 = arith.constant 0 : index
    %15 = vector.load %arg5[%c0_12, %c0_13] : memref<8x1xf32, #tpu.memory_space<vmem>>, vector<8x1xf32>
    %16 = arith.mulf %15, %11 : vector<8x1xf32>
    %17 = vector.broadcast %16 : vector<8x1xf32> to vector<8x128xf32>
    %18 = arith.mulf %14, %17 : vector<8x128xf32>
    %c0_14 = arith.constant 0 : index
    %c0_15 = arith.constant 0 : index
    %19 = vector.load %arg6[%c0_14, %c0_15] : memref<8x1xf32, #tpu.memory_space<vmem>>, vector<8x1xf32>
    %20 = vector.broadcast %19 : vector<8x1xf32> to vector<8x128xf32>
    %21 = arith.addf %18, %20 : vector<8x128xf32>
    %cst_16 = arith.constant 0.000000e+00 : f32
    %cst_17 = arith.constant 6.000000e+00 : f32
    %22 = vector.broadcast %cst_16 : f32 to vector<8x128xf32>
    %23 = arith.maximumf %22, %21 : vector<8x128xf32>
    %24 = vector.broadcast %cst_17 : f32 to vector<8x128xf32>
    %25 = arith.minimumf %24, %23 : vector<8x128xf32>
    %c0_18 = arith.constant 0 : index
    %c0_19 = arith.constant 0 : index
    %26 = vector.load %arg9[%c0_18, %c0_19] : memref<8x128xf32, #tpu.memory_space<vmem>>, vector<8x128xf32>
    tpu.vector_store %arg9[%c0_18, %c0_19], %7 {strides = array<i32>} : memref<8x128xf32, #tpu.memory_space<vmem>>, vector<8x128xf32>,
    %27 = arith.truncf %25 : vector<8x128xf32> to vector<8x128xbf16>
    %c0_20 = arith.constant 0 : index
    %c0_21 = arith.constant 0 : index
    %28 = vector.load %arg10[%c0_20, %c0_21] : memref<8x128xbf16, #tpu.memory_space<vmem>>, vector<8x128xbf16>
    tpu.vector_store %arg10[%c0_20, %c0_21], %27 {strides = array<i32>} : memref<8x128xbf16, #tpu.memory_space<vmem>>, vector<8x128xbf16>,
    return
  }
  func.func @transform_0(%arg0: i32) -> (i32, i32) {
    %c0_i32 = arith.constant 0 : i32
    %c0_i32_0 = arith.constant 0 : i32
    return %c0_i32, %arg0 : i32, i32
  }
  func.func @transform_1(%arg0: i32) -> (i32, i32) {
    %c0_i32 = arith.constant 0 : i32
    %c0_i32_0 = arith.constant 0 : i32
    %c0_i32_1 = arith.constant 0 : i32
    return %c0_i32, %c0_i32_0 : i32, i32
  }
  func.func @transform_2(%arg0: i32) -> (i32, i32) {
    %c0_i32 = arith.constant 0 : i32
    %c0_i32_0 = arith.constant 0 : i32
    %c0_i32_1 = arith.constant 0 : i32
    return %c0_i32, %c0_i32_0 : i32, i32
  }
  func.func @transform_3(%arg0: i32) -> (i32, i32) {
    %c0_i32 = arith.constant 0 : i32
    %c0_i32_0 = arith.constant 0 : i32
    return %c0_i32, %arg0 : i32, i32
  }
  func.func @transform_4(%arg0: i32) -> (i32, i32) {
    %c0_i32 = arith.constant 0 : i32
    %c0_i32_0 = arith.constant 0 : i32
    %c0_i32_1 = arith.constant 0 : i32
    return %c0_i32, %c0_i32_0 : i32, i32
  }
  func.func @transform_5(%arg0: i32) -> (i32, i32) {
    %c0_i32 = arith.constant 0 : i32
    %c0_i32_0 = arith.constant 0 : i32
    %c0_i32_1 = arith.constant 0 : i32
    return %c0_i32, %c0_i32_0 : i32, i32
  }
  func.func @transform_6(%arg0: i32) -> (i32, i32) {
    %c0_i32 = arith.constant 0 : i32
    %c0_i32_0 = arith.constant 0 : i32
    %c0_i32_1 = arith.constant 0 : i32
    return %c0_i32, %c0_i32_0 : i32, i32
  }
  func.func @transform_7(%arg0: i32) -> (i32, i32) {
    %c0_i32 = arith.constant 0 : i32
    %c0_i32_0 = arith.constant 0 : i32
    %c0_i32_1 = arith.constant 0 : i32
    return %c0_i32, %c0_i32_0 : i32, i32
  }
  func.func @transform_8(%arg0: i32) -> (i32, i32) {
    %c0_i32 = arith.constant 0 : i32
    %c0_i32_0 = arith.constant 0 : i32
    return %c0_i32, %arg0 : i32, i32
  }
  func.func @transform_9(%arg0: i32) -> (i32, i32) {
    %c0_i32 = arith.constant 0 : i32
    %c0_i32_0 = arith.constant 0 : i32
    return %c0_i32, %arg0 : i32, i32
  }
}

module attributes {stable_mosaic.version = 11 : i64} {
  func.func @kernel(%arg0: i32, %arg1: memref<216x128xbf16, #tpu.memory_space<vmem>>, %arg2: memref<8x216xbf16, #tpu.memory_space<vmem>>, %arg3: memref<8x1xf32, #tpu.memory_space<vmem>>, %arg4: memref<8x128xf32, #tpu.memory_space<vmem>>, %arg5: memref<8x128xf32, #tpu.memory_space<vmem>>) attributes {dimension_semantics = [#tpu.dimension_semantics<parallel>], iteration_bounds = array<i64: 1>, scalar_prefetch = 0 : i64, scratch_operands = 0 : i64, tpu.core_type = #tpu.core_type<tc>, window_params = [{transform_indices = @transform_0, window_bounds = array<i64: 216, 128>}, {pipeline_mode = #tpu.pipeline_mode<synchronous>, transform_indices = @transform_1, window_bounds = array<i64: 8, 216>}, {pipeline_mode = #tpu.pipeline_mode<synchronous>, transform_indices = @transform_2, window_bounds = array<i64: 8, 1>}, {transform_indices = @transform_3, window_bounds = array<i64: 8, 128>}, {transform_indices = @transform_4, window_bounds = array<i64: 8, 128>}]} {
    %c0 = arith.constant 0 : index
    %c0_0 = arith.constant 0 : index
    %0 = vector.load %arg2[%c0, %c0_0] : memref<8x216xbf16, #tpu.memory_space<vmem>>, vector<8x216xbf16>
    %c0_1 = arith.constant 0 : index
    %c0_2 = arith.constant 0 : index
    %1 = vector.load %arg1[%c0_1, %c0_2] : memref<216x128xbf16, #tpu.memory_space<vmem>>, vector<216x128xbf16>
    %cst = arith.constant dense<0.000000e+00> : vector<8x128xf32>
    %2 = tpu.matmul %0, %1, %cst {dimension_numbers = #tpu.dot_dimension_numbers<[1], [0], [0], [1], [0, 0, 1, 1], [], []>} : vector<8x216xbf16>, vector<216x128xbf16>, vector<8x128xf32> -> vector<8x128xf32>
    %c0_3 = arith.constant 0 : index
    %c0_4 = arith.constant 0 : index
    %3 = vector.load %arg3[%c0_3, %c0_4] : memref<8x1xf32, #tpu.memory_space<vmem>>, vector<8x1xf32>
    %4 = vector.broadcast %3 : vector<8x1xf32> to vector<8x128xf32>
    %5 = arith.addf %2, %4 : vector<8x128xf32>
    %c0_5 = arith.constant 0 : index
    %c0_6 = arith.constant 0 : index
    %6 = vector.load %arg4[%c0_5, %c0_6] : memref<8x128xf32, #tpu.memory_space<vmem>>, vector<8x128xf32>
    %7 = arith.addf %5, %6 : vector<8x128xf32>
    %c0_7 = arith.constant 0 : index
    %c0_8 = arith.constant 0 : index
    %8 = vector.load %arg5[%c0_7, %c0_8] : memref<8x128xf32, #tpu.memory_space<vmem>>, vector<8x128xf32>
    tpu.vector_store %arg5[%c0_7, %c0_8], %7 {strides = array<i32>} : memref<8x128xf32, #tpu.memory_space<vmem>>, vector<8x128xf32>,
    return
  }
  func.func @transform_0(%arg0: i32) -> (i32, i32) {
    %c0_i32 = arith.constant 0 : i32
    %c0_i32_0 = arith.constant 0 : i32
    return %c0_i32, %arg0 : i32, i32
  }
  func.func @transform_1(%arg0: i32) -> (i32, i32) {
    %c0_i32 = arith.constant 0 : i32
    %c0_i32_0 = arith.constant 0 : i32
    %c0_i32_1 = arith.constant 0 : i32
    return %c0_i32, %c0_i32_0 : i32, i32
  }
  func.func @transform_2(%arg0: i32) -> (i32, i32) {
    %c0_i32 = arith.constant 0 : i32
    %c0_i32_0 = arith.constant 0 : i32
    %c0_i32_1 = arith.constant 0 : i32
    return %c0_i32, %c0_i32_0 : i32, i32
  }
  func.func @transform_3(%arg0: i32) -> (i32, i32) {
    %c0_i32 = arith.constant 0 : i32
    %c0_i32_0 = arith.constant 0 : i32
    return %c0_i32, %arg0 : i32, i32
  }
  func.func @transform_4(%arg0: i32) -> (i32, i32) {
    %c0_i32 = arith.constant 0 : i32
    %c0_i32_0 = arith.constant 0 : i32
    return %c0_i32, %arg0 : i32, i32
  }
}

module attributes {stable_mosaic.version = 11 : i64} {
  func.func @kernel(%arg0: i32, %arg1: memref<216x128xbf16, #tpu.memory_space<vmem>>, %arg2: memref<8x216xbf16, #tpu.memory_space<vmem>>, %arg3: memref<8x1xf32, #tpu.memory_space<vmem>>, %arg4: memref<8x1xf32, #tpu.memory_space<vmem>>, %arg5: memref<8x1xf32, #tpu.memory_space<vmem>>, %arg6: memref<8x1xf32, #tpu.memory_space<vmem>>, %arg7: memref<8x1xf32, #tpu.memory_space<vmem>>, %arg8: memref<8x128xbf16, #tpu.memory_space<vmem>>) attributes {dimension_semantics = [#tpu.dimension_semantics<parallel>], iteration_bounds = array<i64: 1>, scalar_prefetch = 0 : i64, scratch_operands = 0 : i64, tpu.core_type = #tpu.core_type<tc>, window_params = [{transform_indices = @transform_0, window_bounds = array<i64: 216, 128>}, {pipeline_mode = #tpu.pipeline_mode<synchronous>, transform_indices = @transform_1, window_bounds = array<i64: 8, 216>}, {pipeline_mode = #tpu.pipeline_mode<synchronous>, transform_indices = @transform_2, window_bounds = array<i64: 8, 1>}, {pipeline_mode = #tpu.pipeline_mode<synchronous>, transform_indices = @transform_3, window_bounds = array<i64: 8, 1>}, {pipeline_mode = #tpu.pipeline_mode<synchronous>, transform_indices = @transform_4, window_bounds = array<i64: 8, 1>}, {pipeline_mode = #tpu.pipeline_mode<synchronous>, transform_indices = @transform_5, window_bounds = array<i64: 8, 1>}, {pipeline_mode = #tpu.pipeline_mode<synchronous>, transform_indices = @transform_6, window_bounds = array<i64: 8, 1>}, {transform_indices = @transform_7, window_bounds = array<i64: 8, 128>}]} {
    %c0 = arith.constant 0 : index
    %c0_0 = arith.constant 0 : index
    %0 = vector.load %arg2[%c0, %c0_0] : memref<8x216xbf16, #tpu.memory_space<vmem>>, vector<8x216xbf16>
    %c0_1 = arith.constant 0 : index
    %c0_2 = arith.constant 0 : index
    %1 = vector.load %arg1[%c0_1, %c0_2] : memref<216x128xbf16, #tpu.memory_space<vmem>>, vector<216x128xbf16>
    %cst = arith.constant dense<0.000000e+00> : vector<8x128xf32>
    %2 = tpu.matmul %0, %1, %cst {dimension_numbers = #tpu.dot_dimension_numbers<[1], [0], [0], [1], [0, 0, 1, 1], [], []>} : vector<8x216xbf16>, vector<216x128xbf16>, vector<8x128xf32> -> vector<8x128xf32>
    %c0_3 = arith.constant 0 : index
    %c0_4 = arith.constant 0 : index
    %3 = vector.load %arg3[%c0_3, %c0_4] : memref<8x1xf32, #tpu.memory_space<vmem>>, vector<8x1xf32>
    %4 = vector.broadcast %3 : vector<8x1xf32> to vector<8x128xf32>
    %5 = arith.addf %2, %4 : vector<8x128xf32>
    %c0_5 = arith.constant 0 : index
    %c0_6 = arith.constant 0 : index
    %6 = vector.load %arg7[%c0_5, %c0_6] : memref<8x1xf32, #tpu.memory_space<vmem>>, vector<8x1xf32>
    %cst_7 = arith.constant 9.99999974E-6 : f32
    %7 = vector.broadcast %cst_7 : f32 to vector<8x1xf32>
    %8 = arith.addf %6, %7 : vector<8x1xf32>
    %9 = math.rsqrt %8 : vector<8x1xf32>
    %c0_8 = arith.constant 0 : index
    %c0_9 = arith.constant 0 : index
    %10 = vector.load %arg6[%c0_8, %c0_9] : memref<8x1xf32, #tpu.memory_space<vmem>>, vector<8x1xf32>
    %11 = vector.broadcast %10 : vector<8x1xf32> to vector<8x128xf32>
    %12 = arith.subf %5, %11 : vector<8x128xf32>
    %c0_10 = arith.constant 0 : index
    %c0_11 = arith.constant 0 : index
    %13 = vector.load %arg4[%c0_10, %c0_11] : memref<8x1xf32, #tpu.memory_space<vmem>>, vector<8x1xf32>
    %14 = arith.mulf %13, %9 : vector<8x1xf32>
    %15 = vector.broadcast %14 : vector<8x1xf32> to vector<8x128xf32>
    %16 = arith.mulf %12, %15 : vector<8x128xf32>
    %c0_12 = arith.constant 0 : index
    %c0_13 = arith.constant 0 : index
    %17 = vector.load %arg5[%c0_12, %c0_13] : memref<8x1xf32, #tpu.memory_space<vmem>>, vector<8x1xf32>
    %18 = vector.broadcast %17 : vector<8x1xf32> to vector<8x128xf32>
    %19 = arith.addf %16, %18 : vector<8x128xf32>
    %cst_14 = arith.constant 0.000000e+00 : f32
    %cst_15 = arith.constant 6.000000e+00 : f32
    %20 = vector.broadcast %cst_14 : f32 to vector<8x128xf32>
    %21 = arith.maximumf %20, %19 : vector<8x128xf32>
    %22 = vector.broadcast %cst_15 : f32 to vector<8x128xf32>
    %23 = arith.minimumf %22, %21 : vector<8x128xf32>
    %24 = arith.truncf %23 : vector<8x128xf32> to vector<8x128xbf16>
    %c0_16 = arith.constant 0 : index
    %c0_17 = arith.constant 0 : index
    %25 = vector.load %arg8[%c0_16, %c0_17] : memref<8x128xbf16, #tpu.memory_space<vmem>>, vector<8x128xbf16>
    tpu.vector_store %arg8[%c0_16, %c0_17], %24 {strides = array<i32>} : memref<8x128xbf16, #tpu.memory_space<vmem>>, vector<8x128xbf16>,
    return
  }
  func.func @transform_0(%arg0: i32) -> (i32, i32) {
    %c0_i32 = arith.constant 0 : i32
    %c0_i32_0 = arith.constant 0 : i32
    return %c0_i32, %arg0 : i32, i32
  }
  func.func @transform_1(%arg0: i32) -> (i32, i32) {
    %c0_i32 = arith.constant 0 : i32
    %c0_i32_0 = arith.constant 0 : i32
    %c0_i32_1 = arith.constant 0 : i32
    return %c0_i32, %c0_i32_0 : i32, i32
  }
  func.func @transform_2(%arg0: i32) -> (i32, i32) {
    %c0_i32 = arith.constant 0 : i32
    %c0_i32_0 = arith.constant 0 : i32
    %c0_i32_1 = arith.constant 0 : i32
    return %c0_i32, %c0_i32_0 : i32, i32
  }
  func.func @transform_3(%arg0: i32) -> (i32, i32) {
    %c0_i32 = arith.constant 0 : i32
    %c0_i32_0 = arith.constant 0 : i32
    %c0_i32_1 = arith.constant 0 : i32
    return %c0_i32, %c0_i32_0 : i32, i32
  }
  func.func @transform_4(%arg0: i32) -> (i32, i32) {
    %c0_i32 = arith.constant 0 : i32
    %c0_i32_0 = arith.constant 0 : i32
    %c0_i32_1 = arith.constant 0 : i32
    return %c0_i32, %c0_i32_0 : i32, i32
  }
  func.func @transform_5(%arg0: i32) -> (i32, i32) {
    %c0_i32 = arith.constant 0 : i32
    %c0_i32_0 = arith.constant 0 : i32
    %c0_i32_1 = arith.constant 0 : i32
    return %c0_i32, %c0_i32_0 : i32, i32
  }
  func.func @transform_6(%arg0: i32) -> (i32, i32) {
    %c0_i32 = arith.constant 0 : i32
    %c0_i32_0 = arith.constant 0 : i32
    %c0_i32_1 = arith.constant 0 : i32
    return %c0_i32, %c0_i32_0 : i32, i32
  }
  func.func @transform_7(%arg0: i32) -> (i32, i32) {
    %c0_i32 = arith.constant 0 : i32
    %c0_i32_0 = arith.constant 0 : i32
    return %c0_i32, %arg0 : i32, i32
  }
}

</mosaic_0001>

<llo_original>
// kernel: _lambda_.6
$region0: #{_lambda_.6}
  #allocation0 [shape = 'u32[]', space=smem, size = 0x4, offset = 0x4, fixed_abs, tag = 'smem constant byte address 0x4 - core index']
  #allocation1 [shape = 'u32[72,128]{1,0:T(1,128)}', space=vmem, size = 0x9000, scoped, tag = 'internal scratch']
  %s0 = inlined_call_operand.vmem [shape: bf16[4,128], index: 0, kind: input, shape index: {}]
  %s1 = inlined_call_operand.vmem [shape: bf16[8,4], index: 1, kind: input, shape index: {}]
  %s2 = inlined_call_operand.vmem [shape: f32[8,1], index: 2, kind: input, shape index: {}]
  %s3 = inlined_call_operand.vmem [shape: f32[8,128], index: 3, kind: output, shape index: {}]
  %s4 = sld [smem:[#allocation0]]
  $region22: #{_lambda_.6} parent=0
    _
  %s6 = ssub.s32 1, %s4
  %s7 = scalar_select 0, %s6, %s4
  // Predicated region
  $region2: #{_lambda_.6} parent=0 // pred_check
    _
  $region3: #{_lambda_.6} parent=0 // pred_check_branch
    %9 = sbr.rel (0) target = $region5
  $region4: #{_lambda_.6} parent=0 // pred_region
    _
  $region5: #{_lambda_.6} parent=0 // pred_fallthru
    _
  // Predicated region
  $region6: #{_lambda_.6} parent=0 // pred_check
    _
  $region7: #{_lambda_.6} parent=0 // pred_check_branch
    %11 = sbr.rel (0) target = $region9
  $region8: #{_lambda_.6} parent=0 // pred_region
    _
  $region9: #{_lambda_.6} parent=0 // pred_fallthru
    _
  // Predicated region
  $region10: #{_lambda_.6} parent=0 // pred_check
    _
  $region11: #{_lambda_.6} parent=0 // pred_check_branch
    %13 = sbr.rel (0) target = $region13
  $region12: #{_lambda_.6} parent=0 // pred_region
    _
  $region13: #{_lambda_.6} parent=0 // pred_fallthru
    _
  %v15 = vld [vmem:[%s1] sm:$0xf]
  %v16 = vld [vmem:[%s0] sm:$0x3]
  %v17 = vld [vmem:[%s2] sm:$0xff]
  %19 = vset.pattern.permute.xlu0 0
  %20 = vperm.xlu0 %19, %v17
  %v21 = vpop.permute.xlu0 %20
  %vm23 = vcmask 31744
  %v25 = vsel %vm23, %v15, 0
  %vm27 = vcmask 1041408
  %v29 = vsel %vm27, %v16, 0
  %31 = vmatpush.bf16.msra.mxu0 0
  %32 = vmatpush.bf16.msra.mxu0 0
  %33 = vmatpush.bf16.msra.mxu0 0
  %34 = vmatpush.bf16.msra.mxu0 0
  %35 = vmatpush.bf16.msra.mxu0 0
  %36 = vmatpush.bf16.msra.mxu0 0
  %37 = vmatpush.bf16.msra.mxu0 0
  %38 = vmatpush.bf16.msra.mxu0 %v29
  %39 = vmatmul.bf16.gmra.mxu0 %v25
  %v40 = vpop.f32.mrf.mxu0
  %v41 = vadd.f32 %v21, %v40
  %v42 = vpop.f32.mrf.mxu0
  %43 = vdwg.mxu0
  %44 = vst [vmem:[%s3] sm:$0xff] %v41
  // Predicated region
  $region14: #{_lambda_.6} parent=0 // pred_check
    _
  $region15: #{_lambda_.6} parent=0 // pred_check_branch
    %46 = sbr.rel (0) target = $region17
  $region16: #{_lambda_.6} parent=0 // pred_region
    _
  $region17: #{_lambda_.6} parent=0 // pred_fallthru
    _
  // Predicated region
  $region18: #{_lambda_.6} parent=0 // pred_check
    _
  $region19: #{_lambda_.6} parent=0 // pred_check_branch
    %48 = sbr.rel (0) target = $region21
  $region20: #{_lambda_.6} parent=0 // pred_region
    _
  $region21: #{_lambda_.6} parent=0 // pred_fallthru
    _

// kernel: _lambda_.7
$region0: #{_lambda_.7}
  #allocation0 [shape = 'u32[]', space=smem, size = 0x4, offset = 0x4, fixed_abs, tag = 'smem constant byte address 0x4 - core index']
  #allocation1 [shape = 'u32[72,128]{1,0:T(1,128)}', space=vmem, size = 0x9000, scoped, tag = 'internal scratch']
  %s0 = inlined_call_operand.vmem [shape: f32[4,1024], index: 0, kind: input, shape index: {}]
  %s1 = inlined_call_operand.vmem [shape: f32[4,1], index: 1, kind: input, shape index: {}]
  %s2 = inlined_call_operand.vmem [shape: f32[4,1], index: 2, kind: input, shape index: {}]
  %s3 = inlined_call_operand.vmem [shape: bf16[4,1024], index: 3, kind: output, shape index: {}]
  %s4 = sld [smem:[#allocation0]]
  $region22: #{_lambda_.7} parent=0
    _
  %s6 = ssub.s32 1, %s4
  %s7 = scalar_select 0, %s6, %s4
  // Predicated region
  $region2: #{_lambda_.7} parent=0 // pred_check
    _
  $region3: #{_lambda_.7} parent=0 // pred_check_branch
    %9 = sbr.rel (0) target = $region5
  $region4: #{_lambda_.7} parent=0 // pred_region
    _
  $region5: #{_lambda_.7} parent=0 // pred_fallthru
    _
  // Predicated region
  $region6: #{_lambda_.7} parent=0 // pred_check
    _
  $region7: #{_lambda_.7} parent=0 // pred_check_branch
    %11 = sbr.rel (0) target = $region9
  $region8: #{_lambda_.7} parent=0 // pred_region
    _
  $region9: #{_lambda_.7} parent=0 // pred_fallthru
    _
  // Predicated region
  $region10: #{_lambda_.7} parent=0 // pred_check
    _
  $region11: #{_lambda_.7} parent=0 // pred_check_branch
    %13 = sbr.rel (0) target = $region13
  $region12: #{_lambda_.7} parent=0 // pred_region
    _
  $region13: #{_lambda_.7} parent=0 // pred_fallthru
    _
  %v14 = vld [vmem:[%s0] sm:$0xff]
  %v15 = vld [vmem:[%s0 + $0x8] sm:$0xff]
  %v16 = vld [vmem:[%s0 + $0x10] sm:$0xff]
  %v17 = vld [vmem:[%s0 + $0x18] sm:$0xff]
  %v18 = vld [vmem:[%s1] sm:$0xf]
  %20 = vset.pattern.permute.xlu0 0
  %21 = vperm.xlu0 %20, %v18
  %v22 = vpop.permute.xlu0 %21
  %v24 = vunpack.c.l.s4 839922192
  %v25 = vunpack.c.0.s8 %v24
  %v26 = vperm.slane %v22, %v25
  %v28 = vmul.f32 %v14, %v26
  %v29 = vmul.f32 %v15, %v26
  %v30 = vmul.f32 %v16, %v26
  %v31 = vmul.f32 %v17, %v26
  %v32 = vld [vmem:[%s2] sm:$0xf]
  %34 = vset.pattern.permute.xlu0 0
  %35 = vperm.xlu0 %34, %v32
  %v36 = vpop.permute.xlu0 %35
  %v38 = vunpack.c.l.s4 839922192
  %v39 = vunpack.c.0.s8 %v38
  %v40 = vperm.slane %v36, %v39
  %v42 = vadd.f32 %v28, %v40
  %v43 = vadd.f32 %v29, %v40
  %v44 = vadd.f32 %v30, %v40
  %v45 = vadd.f32 %v31, %v40
  %v46 = vmax.f32 %v42, 0.0
  %v47 = vmax.f32 %v43, 0.0
  %v48 = vmax.f32 %v44, 0.0
  %v49 = vmax.f32 %v45, 0.0
  %v50 = vmin.f32 %v46, 6.0
  %v51 = vmin.f32 %v47, 6.0
  %v52 = vmin.f32 %v48, 6.0
  %v53 = vmin.f32 %v49, 6.0
  %58 = vst [vmem:[#allocation1] ss:$2 sm:$0xff] %v50
  %s59 = scalar_lea.vmem [#allocation1], 16
  %60 = vst [vmem:[%s59] ss:$2 sm:$0xff] %v51
  %s61 = scalar_lea.vmem [#allocation1], 32
  %62 = vst [vmem:[%s61] ss:$2 sm:$0xff] %v52
  %s63 = scalar_lea.vmem [#allocation1], 48
  %64 = vst [vmem:[%s63] ss:$2 sm:$0xff] %v53
  %v65 = vld.sshfl [vmem:[#allocation1] sm:$0xff pattern:$0x75316420]
  %v66 = vld.sshfl [vmem:[#allocation1 + $0x8] sm:$0xff pattern:$0x75316420]
  %v67 = vld.sshfl [vmem:[#allocation1 + $0x10] sm:$0xff pattern:$0x75316420]
  %v68 = vld.sshfl [vmem:[#allocation1 + $0x18] sm:$0xff pattern:$0x75316420]
  %v69 = vld.sshfl [vmem:[#allocation1 + $0x20] sm:$0xff pattern:$0x75316420]
  %v70 = vld.sshfl [vmem:[#allocation1 + $0x28] sm:$0xff pattern:$0x75316420]
  %v71 = vld.sshfl [vmem:[#allocation1 + $0x30] sm:$0xff pattern:$0x75316420]
  %v72 = vld.sshfl [vmem:[#allocation1 + $0x38] sm:$0xff pattern:$0x75316420]
  %v81 = vpack.c.bf16 %v66, %v65
  %v82 = vpack.c.bf16 %v68, %v67
  %v83 = vpack.c.bf16 %v70, %v69
  %v84 = vpack.c.bf16 %v72, %v71
  %v89 = vrot.slane %v81, 2
  %v90 = vrot.slane %v82, 4
  %v91 = vrot.slane %v82, 6
  %v92 = vrot.slane %v83, 2
  %v93 = vrot.slane %v84, 4
  %v94 = vrot.slane %v84, 6
  %vm95 = vcmask 1041408
  %v98 = vsel %vm95, %v81, %v89
  %vm99 = vcmask 1045508
  %v102 = vsel %vm99, %v90, %v91
  %vm103 = vcmask 1043456
  %v104 = vsel %vm103, %v98, %v102
  %v107 = vsel %vm95, %v83, %v92
  %v110 = vsel %vm99, %v93, %v94
  %v111 = vsel %vm103, %v107, %v110
  %114 = vst [vmem:[%s3] sm:$0xff] %v104
  %115 = vst [vmem:[%s3 + $0x8] sm:$0xff] %v111
  // Predicated region
  $region14: #{_lambda_.7} parent=0 // pred_check
    _
  $region15: #{_lambda_.7} parent=0 // pred_check_branch
    %117 = sbr.rel (0) target = $region17
  $region16: #{_lambda_.7} parent=0 // pred_region
    _
  $region17: #{_lambda_.7} parent=0 // pred_fallthru
    _
  // Predicated region
  $region18: #{_lambda_.7} parent=0 // pred_check
    _
  $region19: #{_lambda_.7} parent=0 // pred_check_branch
    %119 = sbr.rel (0) target = $region21
  $region20: #{_lambda_.7} parent=0 // pred_region
    _
  $region21: #{_lambda_.7} parent=0 // pred_fallthru
    _

// kernel: _lambda_.8
$region0: #{_lambda_.8}
  #allocation0 [shape = 'u32[]', space=smem, size = 0x4, offset = 0x4, fixed_abs, tag = 'smem constant byte address 0x4 - core index']
  #allocation1 [shape = 'u32[72,128]{1,0:T(1,128)}', space=vmem, size = 0x9000, scoped, tag = 'internal scratch']
  %s0 = inlined_call_operand.vmem [shape: bf16[108,128], index: 0, kind: input, shape index: {}]
  %s1 = inlined_call_operand.vmem [shape: bf16[8,108], index: 1, kind: input, shape index: {}]
  %s2 = inlined_call_operand.vmem [shape: f32[8,1], index: 2, kind: input, shape index: {}]
  %s3 = inlined_call_operand.vmem [shape: f32[8,1], index: 3, kind: input, shape index: {}]
  %s4 = inlined_call_operand.vmem [shape: f32[8,1], index: 4, kind: input, shape index: {}]
  %s5 = inlined_call_operand.vmem [shape: f32[8,1], index: 5, kind: input, shape index: {}]
  %s6 = inlined_call_operand.vmem [shape: f32[8,1], index: 6, kind: input, shape index: {}]
  %s7 = inlined_call_operand.vmem [shape: bf16[8,128], index: 7, kind: output, shape index: {}]
  %s8 = sld [smem:[#allocation0]]
  $region38: #{_lambda_.8} parent=0
    _
  %s10 = ssub.s32 1, %s8
  %s11 = scalar_select 0, %s10, %s8
  // Predicated region
  $region2: #{_lambda_.8} parent=0 // pred_check
    _
  $region3: #{_lambda_.8} parent=0 // pred_check_branch
    %13 = sbr.rel (0) target = $region5
  $region4: #{_lambda_.8} parent=0 // pred_region
    _
  $region5: #{_lambda_.8} parent=0 // pred_fallthru
    _
  // Predicated region
  $region6: #{_lambda_.8} parent=0 // pred_check
    _
  $region7: #{_lambda_.8} parent=0 // pred_check_branch
    %15 = sbr.rel (0) target = $region9
  $region8: #{_lambda_.8} parent=0 // pred_region
    _
  $region9: #{_lambda_.8} parent=0 // pred_fallthru
    _
  // Predicated region
  $region10: #{_lambda_.8} parent=0 // pred_check
    _
  $region11: #{_lambda_.8} parent=0 // pred_check_branch
    %17 = sbr.rel (0) target = $region13
  $region12: #{_lambda_.8} parent=0 // pred_region
    _
  $region13: #{_lambda_.8} parent=0 // pred_fallthru
    _
  // Predicated region
  $region14: #{_lambda_.8} parent=0 // pred_check
    _
  $region15: #{_lambda_.8} parent=0 // pred_check_branch
    %19 = sbr.rel (0) target = $region17
  $region16: #{_lambda_.8} parent=0 // pred_region
    _
  $region17: #{_lambda_.8} parent=0 // pred_fallthru
    _
  // Predicated region
  $region18: #{_lambda_.8} parent=0 // pred_check
    _
  $region19: #{_lambda_.8} parent=0 // pred_check_branch
    %21 = sbr.rel (0) target = $region21
  $region20: #{_lambda_.8} parent=0 // pred_region
    _
  $region21: #{_lambda_.8} parent=0 // pred_fallthru
    _
  // Predicated region
  $region22: #{_lambda_.8} parent=0 // pred_check
    _
  $region23: #{_lambda_.8} parent=0 // pred_check_branch
    %23 = sbr.rel (0) target = $region25
  $region24: #{_lambda_.8} parent=0 // pred_region
    _
  $region25: #{_lambda_.8} parent=0 // pred_fallthru
    _
  // Predicated region
  $region26: #{_lambda_.8} parent=0 // pred_check
    _
  $region27: #{_lambda_.8} parent=0 // pred_check_branch
    %25 = sbr.rel (0) target = $region29
  $region28: #{_lambda_.8} parent=0 // pred_region
    _
  $region29: #{_lambda_.8} parent=0 // pred_fallthru
    _
  %v27 = vld [vmem:[%s1] sm:$0xf]
  %v28 = vld [vmem:[%s0] sm:$0xf]
  %v29 = vld [vmem:[%s0 + $0x4] sm:$0xf]
  %v30 = vld [vmem:[%s0 + $0x8] sm:$0xf]
  %v31 = vld [vmem:[%s0 + $0xc] sm:$0xf]
  %v32 = vld [vmem:[%s0 + $0x10] sm:$0xf]
  %v33 = vld [vmem:[%s0 + $0x14] sm:$0xf]
  %v34 = vld [vmem:[%s0 + $0x18] sm:$0xf]
  %v35 = vld [vmem:[%s0 + $0x1c] sm:$0xf]
  %v36 = vld [vmem:[%s0 + $0x20] sm:$0xf]
  %v37 = vld [vmem:[%s0 + $0x24] sm:$0xf]
  %v38 = vld [vmem:[%s0 + $0x28] sm:$0xf]
  %v39 = vld [vmem:[%s0 + $0x2c] sm:$0xf]
  %v40 = vld [vmem:[%s0 + $0x30] sm:$0xf]
  %v41 = vld [vmem:[%s0 + $0x34] sm:$0x3]
  %v42 = vld [vmem:[%s2] sm:$0xff]
  %44 = vset.pattern.permute.xlu0 0
  %45 = vperm.xlu0 %44, %v42
  %v46 = vpop.permute.xlu0 %45
  %v62 = vunpack.c.l.b16 %v28
  %v63 = vunpack.c.l.b16 %v29
  %v64 = vunpack.c.l.b16 %v30
  %v65 = vunpack.c.l.b16 %v31
  %v66 = vunpack.c.l.b16 %v32
  %v67 = vunpack.c.l.b16 %v33
  %v68 = vunpack.c.l.b16 %v34
  %v69 = vunpack.c.l.b16 %v35
  %v70 = vunpack.c.l.b16 %v36
  %v71 = vunpack.c.l.b16 %v37
  %v72 = vunpack.c.l.b16 %v38
  %v73 = vunpack.c.l.b16 %v39
  %v74 = vunpack.c.l.b16 %v40
  %v75 = vunpack.c.l.b16 %v41
  %v76 = vpack.c.b16 %v63, %v62
  %v77 = vpack.c.b16 %v65, %v64
  %v78 = vpack.c.b16 %v67, %v66
  %v79 = vpack.c.b16 %v69, %v68
  %v80 = vpack.c.b16 %v71, %v70
  %v81 = vpack.c.b16 %v73, %v72
  %v82 = vpack.c.b16 %v75, %v74
  %vm89 = vcmask 883712
  %v91 = vsel %vm89, %v27, 0
  %vm93 = vcmask 1045504
  %v95 = vsel %vm93, %v82, 0
  %97 = vmatpush.bf16.msra.mxu0 0
  %98 = vmatpush.bf16.msra.mxu0 %v95
  %99 = vmatpush.bf16.msra.mxu0 %v81
  %100 = vmatpush.bf16.msra.mxu0 %v80
  %101 = vmatpush.bf16.msra.mxu0 %v79
  %102 = vmatpush.bf16.msra.mxu0 %v78
  %103 = vmatpush.bf16.msra.mxu0 %v77
  %104 = vmatpush.bf16.msra.mxu0 %v76
  %105 = vmatmul.bf16.gmra.mxu0 %v91
  %v106 = vpop.f32.mrf.mxu0
  %v107 = vadd.f32 %v46, %v106
  %v108 = vpop.f32.mrf.mxu0
  %109 = vdwg.mxu0
  %v110 = vld [vmem:[%s6] sm:$0xff]
  %v111 = vadd.f32 %v110, 1e-05
  %v112 = vrsqrt.pop %v111
  %v113 = vmul.f32 %v112, %v111
  %v114 = vmul.f32 %v113, %v112
  %v115 = vmul.f32 0.5, %v114
  %v116 = vsub.f32 1.5, %v115
  %v117 = vmul.f32 %v112, %v116
  %vm118 = vweird.f32 %v111
  %vm119 = vweird.f32 %v112
  %vm120 = vmor %vm118, %vm119
  %v121 = vsel %vm120, %v112, %v117
  %v122 = vld [vmem:[%s5] sm:$0xff]
  %124 = vset.pattern.permute.xlu0 0
  %125 = vperm.xlu0 %124, %v122
  %v126 = vpop.permute.xlu0 %125
  %v128 = vsub.f32 %v107, %v126
  %v129 = vld [vmem:[%s3] sm:$0xff]
  %v130 = vmul.f32 %v129, %v121
  %132 = vset.pattern.permute.xlu0 0
  %133 = vperm.xlu0 %132, %v130
  %v134 = vpop.permute.xlu0 %133
  %v136 = vmul.f32 %v128, %v134
  %v137 = vld [vmem:[%s4] sm:$0xff]
  %139 = vset.pattern.permute.xlu0 0
  %140 = vperm.xlu0 %139, %v137
  %v141 = vpop.permute.xlu0 %140
  %v143 = vadd.f32 %v136, %v141
  %v144 = vmax.f32 %v143, 0.0
  %v145 = vmin.f32 %v144, 6.0
  %v146 = vpack.c.bf16 %v145, %v145
  %147 = vst [vmem:[%s7] sm:$0xf] %v146
  // Predicated region
  $region30: #{_lambda_.8} parent=0 // pred_check
    _
  $region31: #{_lambda_.8} parent=0 // pred_check_branch
    %149 = sbr.rel (0) target = $region33
  $region32: #{_lambda_.8} parent=0 // pred_region
    _
  $region33: #{_lambda_.8} parent=0 // pred_fallthru
    _
  // Predicated region
  $region34: #{_lambda_.8} parent=0 // pred_check
    _
  $region35: #{_lambda_.8} parent=0 // pred_check_branch
    %151 = sbr.rel (0) target = $region37
  $region36: #{_lambda_.8} parent=0 // pred_region
    _
  $region37: #{_lambda_.8} parent=0 // pred_fallthru
    _

// kernel: _lambda_.9
$region0: #{_lambda_.9}
  #allocation0 [shape = 'u32[]', space=smem, size = 0x4, offset = 0x4, fixed_abs, tag = 'smem constant byte address 0x4 - core index']
  #allocation1 [shape = 'u32[72,128]{1,0:T(1,128)}', space=vmem, size = 0x9000, scoped, tag = 'internal scratch']
  %s0 = inlined_call_operand.vmem [shape: bf16[216,128], index: 0, kind: input, shape index: {}]
  %s1 = inlined_call_operand.vmem [shape: bf16[8,216], index: 1, kind: input, shape index: {}]
  %s2 = inlined_call_operand.vmem [shape: f32[8,1], index: 2, kind: input, shape index: {}]
  %s3 = inlined_call_operand.vmem [shape: f32[8,128], index: 3, kind: input, shape index: {}]
  %s4 = inlined_call_operand.vmem [shape: f32[8,1], index: 4, kind: input, shape index: {}]
  %s5 = inlined_call_operand.vmem [shape: f32[8,1], index: 5, kind: input, shape index: {}]
  %s6 = inlined_call_operand.vmem [shape: f32[8,1], index: 6, kind: input, shape index: {}]
  %s7 = inlined_call_operand.vmem [shape: f32[8,1], index: 7, kind: input, shape index: {}]
  %s8 = inlined_call_operand.vmem [shape: f32[8,128], index: 8, kind: output, shape index: {0}]
  %s9 = inlined_call_operand.vmem [shape: bf16[8,128], index: 9, kind: output, shape index: {1}]
  %10 = xla_tuple %s8, %s9
  %s11 = sld [smem:[#allocation0]]
  $region50: #{_lambda_.9} parent=0
    _
  %s13 = ssub.s32 1, %s11
  %s14 = scalar_select 0, %s13, %s11
  // Predicated region
  $region2: #{_lambda_.9} parent=0 // pred_check
    _
  $region3: #{_lambda_.9} parent=0 // pred_check_branch
    %16 = sbr.rel (0) target = $region5
  $region4: #{_lambda_.9} parent=0 // pred_region
    _
  $region5: #{_lambda_.9} parent=0 // pred_fallthru
    _
  // Predicated region
  $region6: #{_lambda_.9} parent=0 // pred_check
    _
  $region7: #{_lambda_.9} parent=0 // pred_check_branch
    %18 = sbr.rel (0) target = $region9
  $region8: #{_lambda_.9} parent=0 // pred_region
    _
  $region9: #{_lambda_.9} parent=0 // pred_fallthru
    _
  // Predicated region
  $region10: #{_lambda_.9} parent=0 // pred_check
    _
  $region11: #{_lambda_.9} parent=0 // pred_check_branch
    %20 = sbr.rel (0) target = $region13
  $region12: #{_lambda_.9} parent=0 // pred_region
    _
  $region13: #{_lambda_.9} parent=0 // pred_fallthru
    _
  // Predicated region
  $region14: #{_lambda_.9} parent=0 // pred_check
    _
  $region15: #{_lambda_.9} parent=0 // pred_check_branch
    %22 = sbr.rel (0) target = $region17
  $region16: #{_lambda_.9} parent=0 // pred_region
    _
  $region17: #{_lambda_.9} parent=0 // pred_fallthru
    _
  // Predicated region
  $region18: #{_lambda_.9} parent=0 // pred_check
    _
  $region19: #{_lambda_.9} parent=0 // pred_check_branch
    %24 = sbr.rel (0) target = $region21
  $region20: #{_lambda_.9} parent=0 // pred_region
    _
  $region21: #{_lambda_.9} parent=0 // pred_fallthru
    _
  // Predicated region
  $region22: #{_lambda_.9} parent=0 // pred_check
    _
  $region23: #{_lambda_.9} parent=0 // pred_check_branch
    %26 = sbr.rel (0) target = $region25
  $region24: #{_lambda_.9} parent=0 // pred_region
    _
  $region25: #{_lambda_.9} parent=0 // pred_fallthru
    _
  // Predicated region
  $region26: #{_lambda_.9} parent=0 // pred_check
    _
  $region27: #{_lambda_.9} parent=0 // pred_check_branch
    %28 = sbr.rel (0) target = $region29
  $region28: #{_lambda_.9} parent=0 // pred_region
    _
  $region29: #{_lambda_.9} parent=0 // pred_fallthru
    _
  // Predicated region
  $region30: #{_lambda_.9} parent=0 // pred_check
    _
  $region31: #{_lambda_.9} parent=0 // pred_check_branch
    %30 = sbr.rel (0) target = $region33
  $region32: #{_lambda_.9} parent=0 // pred_region
    _
  $region33: #{_lambda_.9} parent=0 // pred_fallthru
    _
  %v32 = vld [vmem:[%s1] sm:$0xff]
  %v33 = vld [vmem:[%s0] sm:$0xf]
  %v34 = vld [vmem:[%s0 + $0x4] sm:$0xf]
  %v35 = vld [vmem:[%s0 + $0x8] sm:$0xf]
  %v36 = vld [vmem:[%s0 + $0xc] sm:$0xf]
  %v37 = vld [vmem:[%s0 + $0x10] sm:$0xf]
  %v38 = vld [vmem:[%s0 + $0x14] sm:$0xf]
  %v39 = vld [vmem:[%s0 + $0x18] sm:$0xf]
  %v40 = vld [vmem:[%s0 + $0x1c] sm:$0xf]
  %v41 = vld [vmem:[%s0 + $0x20] sm:$0xf]
  %v42 = vld [vmem:[%s0 + $0x24] sm:$0xf]
  %v43 = vld [vmem:[%s0 + $0x28] sm:$0xf]
  %v44 = vld [vmem:[%s0 + $0x2c] sm:$0xf]
  %v45 = vld [vmem:[%s0 + $0x30] sm:$0xf]
  %v46 = vld [vmem:[%s0 + $0x34] sm:$0xf]
  %v47 = vld [vmem:[%s0 + $0x38] sm:$0xf]
  %v48 = vld [vmem:[%s0 + $0x3c] sm:$0xf]
  %v49 = vld [vmem:[%s0 + $0x40] sm:$0xf]
  %v50 = vld [vmem:[%s0 + $0x44] sm:$0xf]
  %v51 = vld [vmem:[%s0 + $0x48] sm:$0xf]
  %v52 = vld [vmem:[%s0 + $0x4c] sm:$0xf]
  %v53 = vld [vmem:[%s0 + $0x50] sm:$0xf]
  %v54 = vld [vmem:[%s0 + $0x54] sm:$0xf]
  %v55 = vld [vmem:[%s0 + $0x58] sm:$0xf]
  %v56 = vld [vmem:[%s0 + $0x5c] sm:$0xf]
  %v57 = vld [vmem:[%s0 + $0x60] sm:$0xf]
  %v58 = vld [vmem:[%s0 + $0x64] sm:$0xf]
  %v59 = vld [vmem:[%s0 + $0x68] sm:$0xf]
  %v60 = vld [vmem:[%s2] sm:$0xff]
  %62 = vset.pattern.permute.xlu0 0
  %63 = vperm.xlu0 %62, %v60
  %v64 = vpop.permute.xlu0 %63
  %v67 = vunpack.c.l.b16 %v32
  %v68 = vunpack.c.h.b16 %v32
  %v69 = vpack.c.b16 %v67, %v67
  %v70 = vpack.c.b16 %v68, %v68
  %v99 = vunpack.c.l.b16 %v33
  %v100 = vunpack.c.l.b16 %v34
  %v101 = vunpack.c.l.b16 %v35
  %v102 = vunpack.c.l.b16 %v36
  %v103 = vunpack.c.l.b16 %v37
  %v104 = vunpack.c.l.b16 %v38
  %v105 = vunpack.c.l.b16 %v39
  %v106 = vunpack.c.l.b16 %v40
  %v107 = vunpack.c.l.b16 %v41
  %v108 = vunpack.c.l.b16 %v42
  %v109 = vunpack.c.l.b16 %v43
  %v110 = vunpack.c.l.b16 %v44
  %v111 = vunpack.c.l.b16 %v45
  %v112 = vunpack.c.l.b16 %v46
  %v113 = vunpack.c.l.b16 %v47
  %v114 = vunpack.c.l.b16 %v48
  %v115 = vunpack.c.l.b16 %v49
  %v116 = vunpack.c.l.b16 %v50
  %v117 = vunpack.c.l.b16 %v51
  %v118 = vunpack.c.l.b16 %v52
  %v119 = vunpack.c.l.b16 %v53
  %v120 = vunpack.c.l.b16 %v54
  %v121 = vunpack.c.l.b16 %v55
  %v122 = vunpack.c.l.b16 %v56
  %v123 = vunpack.c.l.b16 %v57
  %v124 = vunpack.c.l.b16 %v58
  %v125 = vunpack.c.l.b16 %v59
  %v126 = vpack.c.b16 %v100, %v99
  %v127 = vpack.c.b16 %v102, %v101
  %v128 = vpack.c.b16 %v104, %v103
  %v129 = vpack.c.b16 %v106, %v105
  %v130 = vpack.c.b16 %v108, %v107
  %v131 = vpack.c.b16 %v110, %v109
  %v132 = vpack.c.b16 %v112, %v111
  %v133 = vpack.c.b16 %v114, %v113
  %v134 = vpack.c.b16 %v116, %v115
  %v135 = vpack.c.b16 %v118, %v117
  %v136 = vpack.c.b16 %v120, %v119
  %v137 = vpack.c.b16 %v122, %v121
  %v138 = vpack.c.b16 %v124, %v123
  %v139 = vpack.c.b16 %v125, %v125
  %vm153 = vcmask 719872
  %v155 = vsel %vm153, %v70, 0
  %vm157 = vcmask 1043456
  %v159 = vsel %vm157, %v139, 0
  %161 = vmatpush.bf16.msra.mxu0 %v133
  %162 = vmatpush.bf16.msra.mxu0 %v132
  %163 = vmatpush.bf16.msra.mxu0 %v131
  %164 = vmatpush.bf16.msra.mxu0 %v130
  %165 = vmatpush.bf16.msra.mxu0 %v129
  %166 = vmatpush.bf16.msra.mxu0 %v128
  %167 = vmatpush.bf16.msra.mxu0 %v127
  %168 = vmatpush.bf16.msra.mxu0 %v126
  %169 = vmatmul.bf16.gmra.mxu0 %v69
  %v170 = vpop.f32.mrf.mxu0
  %v171 = vadd.f32 %v64, %v170
  %v172 = vpop.f32.mrf.mxu0
  %173 = vdwg.mxu0
  %174 = vmatpush.bf16.msra.mxu0 0
  %175 = vmatpush.bf16.msra.mxu0 0
  %176 = vmatpush.bf16.msra.mxu0 %v159
  %177 = vmatpush.bf16.msra.mxu0 %v138
  %178 = vmatpush.bf16.msra.mxu0 %v137
  %179 = vmatpush.bf16.msra.mxu0 %v136
  %180 = vmatpush.bf16.msra.mxu0 %v135
  %181 = vmatpush.bf16.msra.mxu0 %v134
  %182 = vmatmul.bf16.gmra.mxu0 %v155
  %v183 = vpop.f32.mrf.mxu0
  %v184 = vadd.f32 %v171, %v183
  %v185 = vpop.f32.mrf.mxu0
  %186 = vdwg.mxu0
  %v187 = vld [vmem:[%s3] sm:$0xff]
  %v188 = vadd.f32 %v184, %v187
  %v189 = vld [vmem:[%s7] sm:$0xff]
  %v190 = vadd.f32 %v189, 1e-05
  %v191 = vrsqrt.pop %v190
  %v192 = vmul.f32 %v191, %v190
  %v193 = vmul.f32 %v192, %v191
  %v194 = vmul.f32 0.5, %v193
  %v195 = vsub.f32 1.5, %v194
  %v196 = vmul.f32 %v191, %v195
  %vm197 = vweird.f32 %v190
  %vm198 = vweird.f32 %v191
  %vm199 = vmor %vm197, %vm198
  %v200 = vsel %vm199, %v191, %v196
  %v201 = vld [vmem:[%s6] sm:$0xff]
  %203 = vset.pattern.permute.xlu0 0
  %204 = vperm.xlu0 %203, %v201
  %v205 = vpop.permute.xlu0 %204
  %v207 = vsub.f32 %v188, %v205
  %v208 = vld [vmem:[%s4] sm:$0xff]
  %v209 = vmul.f32 %v208, %v200
  %211 = vset.pattern.permute.xlu0 0
  %212 = vperm.xlu0 %211, %v209
  %v213 = vpop.permute.xlu0 %212
  %v215 = vmul.f32 %v207, %v213
  %v216 = vld [vmem:[%s5] sm:$0xff]
  %218 = vset.pattern.permute.xlu0 0
  %219 = vperm.xlu0 %218, %v216
  %v220 = vpop.permute.xlu0 %219
  %v222 = vadd.f32 %v215, %v220
  %v223 = vmax.f32 %v222, 0.0
  %v224 = vmin.f32 %v223, 6.0
  %225 = vst [vmem:[%s8] sm:$0xff] %v188
  %v226 = vpack.c.bf16 %v224, %v224
  %227 = vst [vmem:[%s9] sm:$0xf] %v226
  // Predicated region
  $region34: #{_lambda_.9} parent=0 // pred_check
    _
  $region35: #{_lambda_.9} parent=0 // pred_check_branch
    %229 = sbr.rel (0) target = $region37
  $region36: #{_lambda_.9} parent=0 // pred_region
    _
  $region37: #{_lambda_.9} parent=0 // pred_fallthru
    _
  // Predicated region
  $region38: #{_lambda_.9} parent=0 // pred_check
    _
  $region39: #{_lambda_.9} parent=0 // pred_check_branch
    %231 = sbr.rel (0) target = $region41
  $region40: #{_lambda_.9} parent=0 // pred_region
    _
  $region41: #{_lambda_.9} parent=0 // pred_fallthru
    _
  // Predicated region
  $region42: #{_lambda_.9} parent=0 // pred_check
    _
  $region43: #{_lambda_.9} parent=0 // pred_check_branch
    %233 = sbr.rel (0) target = $region45
  $region44: #{_lambda_.9} parent=0 // pred_region
    _
  $region45: #{_lambda_.9} parent=0 // pred_fallthru
    _
  // Predicated region
  $region46: #{_lambda_.9} parent=0 // pred_check
    _
  $region47: #{_lambda_.9} parent=0 // pred_check_branch
    %235 = sbr.rel (0) target = $region49
  $region48: #{_lambda_.9} parent=0 // pred_region
    _
  $region49: #{_lambda_.9} parent=0 // pred_fallthru
    _

// kernel: _lambda_.11
$region0: #{_lambda_.11}
  #allocation0 [shape = 'u32[]', space=smem, size = 0x4, offset = 0x4, fixed_abs, tag = 'smem constant byte address 0x4 - core index']
  #allocation1 [shape = 'u32[72,128]{1,0:T(1,128)}', space=vmem, size = 0x9000, scoped, tag = 'internal scratch']
  %s0 = inlined_call_operand.vmem [shape: bf16[216,128], index: 0, kind: input, shape index: {}]
  %s1 = inlined_call_operand.vmem [shape: bf16[8,216], index: 1, kind: input, shape index: {}]
  %s2 = inlined_call_operand.vmem [shape: f32[8,1], index: 2, kind: input, shape index: {}]
  %s3 = inlined_call_operand.vmem [shape: f32[8,128], index: 3, kind: input, shape index: {}]
  %s4 = inlined_call_operand.vmem [shape: f32[8,128], index: 4, kind: output, shape index: {}]
  %s5 = sld [smem:[#allocation0]]
  $region26: #{_lambda_.11} parent=0
    _
  %s7 = ssub.s32 1, %s5
  %s8 = scalar_select 0, %s7, %s5
  // Predicated region
  $region2: #{_lambda_.11} parent=0 // pred_check
    _
  $region3: #{_lambda_.11} parent=0 // pred_check_branch
    %10 = sbr.rel (0) target = $region5
  $region4: #{_lambda_.11} parent=0 // pred_region
    _
  $region5: #{_lambda_.11} parent=0 // pred_fallthru
    _
  // Predicated region
  $region6: #{_lambda_.11} parent=0 // pred_check
    _
  $region7: #{_lambda_.11} parent=0 // pred_check_branch
    %12 = sbr.rel (0) target = $region9
  $region8: #{_lambda_.11} parent=0 // pred_region
    _
  $region9: #{_lambda_.11} parent=0 // pred_fallthru
    _
  // Predicated region
  $region10: #{_lambda_.11} parent=0 // pred_check
    _
  $region11: #{_lambda_.11} parent=0 // pred_check_branch
    %14 = sbr.rel (0) target = $region13
  $region12: #{_lambda_.11} parent=0 // pred_region
    _
  $region13: #{_lambda_.11} parent=0 // pred_fallthru
    _
  // Predicated region
  $region14: #{_lambda_.11} parent=0 // pred_check
    _
  $region15: #{_lambda_.11} parent=0 // pred_check_branch
    %16 = sbr.rel (0) target = $region17
  $region16: #{_lambda_.11} parent=0 // pred_region
    _
  $region17: #{_lambda_.11} parent=0 // pred_fallthru
    _
  %v18 = vld [vmem:[%s1] sm:$0xff]
  %v19 = vld [vmem:[%s0] sm:$0xf]
  %v20 = vld [vmem:[%s0 + $0x4] sm:$0xf]
  %v21 = vld [vmem:[%s0 + $0x8] sm:$0xf]
  %v22 = vld [vmem:[%s0 + $0xc] sm:$0xf]
  %v23 = vld [vmem:[%s0 + $0x10] sm:$0xf]
  %v24 = vld [vmem:[%s0 + $0x14] sm:$0xf]
  %v25 = vld [vmem:[%s0 + $0x18] sm:$0xf]
  %v26 = vld [vmem:[%s0 + $0x1c] sm:$0xf]
  %v27 = vld [vmem:[%s0 + $0x20] sm:$0xf]
  %v28 = vld [vmem:[%s0 + $0x24] sm:$0xf]
  %v29 = vld [vmem:[%s0 + $0x28] sm:$0xf]
  %v30 = vld [vmem:[%s0 + $0x2c] sm:$0xf]
  %v31 = vld [vmem:[%s0 + $0x30] sm:$0xf]
  %v32 = vld [vmem:[%s0 + $0x34] sm:$0xf]
  %v33 = vld [vmem:[%s0 + $0x38] sm:$0xf]
  %v34 = vld [vmem:[%s0 + $0x3c] sm:$0xf]
  %v35 = vld [vmem:[%s0 + $0x40] sm:$0xf]
  %v36 = vld [vmem:[%s0 + $0x44] sm:$0xf]
  %v37 = vld [vmem:[%s0 + $0x48] sm:$0xf]
  %v38 = vld [vmem:[%s0 + $0x4c] sm:$0xf]
  %v39 = vld [vmem:[%s0 + $0x50] sm:$0xf]
  %v40 = vld [vmem:[%s0 + $0x54] sm:$0xf]
  %v41 = vld [vmem:[%s0 + $0x58] sm:$0xf]
  %v42 = vld [vmem:[%s0 + $0x5c] sm:$0xf]
  %v43 = vld [vmem:[%s0 + $0x60] sm:$0xf]
  %v44 = vld [vmem:[%s0 + $0x64] sm:$0xf]
  %v45 = vld [vmem:[%s0 + $0x68] sm:$0xf]
  %v46 = vld [vmem:[%s2] sm:$0xff]
  %48 = vset.pattern.permute.xlu0 0
  %49 = vperm.xlu0 %48, %v46
  %v50 = vpop.permute.xlu0 %49
  %v53 = vunpack.c.l.b16 %v18
  %v54 = vunpack.c.h.b16 %v18
  %v55 = vpack.c.b16 %v53, %v53
  %v56 = vpack.c.b16 %v54, %v54
  %v85 = vunpack.c.l.b16 %v19
  %v86 = vunpack.c.l.b16 %v20
  %v87 = vunpack.c.l.b16 %v21
  %v88 = vunpack.c.l.b16 %v22
  %v89 = vunpack.c.l.b16 %v23
  %v90 = vunpack.c.l.b16 %v24
  %v91 = vunpack.c.l.b16 %v25
  %v92 = vunpack.c.l.b16 %v26
  %v93 = vunpack.c.l.b16 %v27
  %v94 = vunpack.c.l.b16 %v28
  %v95 = vunpack.c.l.b16 %v29
  %v96 = vunpack.c.l.b16 %v30
  %v97 = vunpack.c.l.b16 %v31
  %v98 = vunpack.c.l.b16 %v32
  %v99 = vunpack.c.l.b16 %v33
  %v100 = vunpack.c.l.b16 %v34
  %v101 = vunpack.c.l.b16 %v35
  %v102 = vunpack.c.l.b16 %v36
  %v103 = vunpack.c.l.b16 %v37
  %v104 = vunpack.c.l.b16 %v38
  %v105 = vunpack.c.l.b16 %v39
  %v106 = vunpack.c.l.b16 %v40
  %v107 = vunpack.c.l.b16 %v41
  %v108 = vunpack.c.l.b16 %v42
  %v109 = vunpack.c.l.b16 %v43
  %v110 = vunpack.c.l.b16 %v44
  %v111 = vunpack.c.l.b16 %v45
  %v112 = vpack.c.b16 %v86, %v85
  %v113 = vpack.c.b16 %v88, %v87
  %v114 = vpack.c.b16 %v90, %v89
  %v115 = vpack.c.b16 %v92, %v91
  %v116 = vpack.c.b16 %v94, %v93
  %v117 = vpack.c.b16 %v96, %v95
  %v118 = vpack.c.b16 %v98, %v97
  %v119 = vpack.c.b16 %v100, %v99
  %v120 = vpack.c.b16 %v102, %v101
  %v121 = vpack.c.b16 %v104, %v103
  %v122 = vpack.c.b16 %v106, %v105
  %v123 = vpack.c.b16 %v108, %v107
  %v124 = vpack.c.b16 %v110, %v109
  %v125 = vpack.c.b16 %v111, %v111
  %vm139 = vcmask 719872
  %v141 = vsel %vm139, %v56, 0
  %vm143 = vcmask 1043456
  %v145 = vsel %vm143, %v125, 0
  %147 = vmatpush.bf16.msra.mxu0 %v119
  %148 = vmatpush.bf16.msra.mxu0 %v118
  %149 = vmatpush.bf16.msra.mxu0 %v117
  %150 = vmatpush.bf16.msra.mxu0 %v116
  %151 = vmatpush.bf16.msra.mxu0 %v115
  %152 = vmatpush.bf16.msra.mxu0 %v114
  %153 = vmatpush.bf16.msra.mxu0 %v113
  %154 = vmatpush.bf16.msra.mxu0 %v112
  %155 = vmatmul.bf16.gmra.mxu0 %v55
  %v156 = vpop.f32.mrf.mxu0
  %v157 = vadd.f32 %v50, %v156
  %v158 = vpop.f32.mrf.mxu0
  %159 = vdwg.mxu0
  %160 = vmatpush.bf16.msra.mxu0 0
  %161 = vmatpush.bf16.msra.mxu0 0
  %162 = vmatpush.bf16.msra.mxu0 %v145
  %163 = vmatpush.bf16.msra.mxu0 %v124
  %164 = vmatpush.bf16.msra.mxu0 %v123
  %165 = vmatpush.bf16.msra.mxu0 %v122
  %166 = vmatpush.bf16.msra.mxu0 %v121
  %167 = vmatpush.bf16.msra.mxu0 %v120
  %168 = vmatmul.bf16.gmra.mxu0 %v141
  %v169 = vpop.f32.mrf.mxu0
  %v170 = vadd.f32 %v157, %v169
  %v171 = vpop.f32.mrf.mxu0
  %172 = vdwg.mxu0
  %v173 = vld [vmem:[%s3] sm:$0xff]
  %v174 = vadd.f32 %v170, %v173
  %175 = vst [vmem:[%s4] sm:$0xff] %v174
  // Predicated region
  $region18: #{_lambda_.11} parent=0 // pred_check
    _
  $region19: #{_lambda_.11} parent=0 // pred_check_branch
    %177 = sbr.rel (0) target = $region21
  $region20: #{_lambda_.11} parent=0 // pred_region
    _
  $region21: #{_lambda_.11} parent=0 // pred_fallthru
    _
  // Predicated region
  $region22: #{_lambda_.11} parent=0 // pred_check
    _
  $region23: #{_lambda_.11} parent=0 // pred_check_branch
    %179 = sbr.rel (0) target = $region25
  $region24: #{_lambda_.11} parent=0 // pred_region
    _
  $region25: #{_lambda_.11} parent=0 // pred_fallthru
    _

// kernel: _lambda_.10
$region0: #{_lambda_.10}
  #allocation0 [shape = 'u32[]', space=smem, size = 0x4, offset = 0x4, fixed_abs, tag = 'smem constant byte address 0x4 - core index']
  #allocation1 [shape = 'u32[72,128]{1,0:T(1,128)}', space=vmem, size = 0x9000, scoped, tag = 'internal scratch']
  %s0 = inlined_call_operand.vmem [shape: bf16[216,128], index: 0, kind: input, shape index: {}]
  %s1 = inlined_call_operand.vmem [shape: bf16[8,216], index: 1, kind: input, shape index: {}]
  %s2 = inlined_call_operand.vmem [shape: f32[8,1], index: 2, kind: input, shape index: {}]
  %s3 = inlined_call_operand.vmem [shape: f32[8,1], index: 3, kind: input, shape index: {}]
  %s4 = inlined_call_operand.vmem [shape: f32[8,1], index: 4, kind: input, shape index: {}]
  %s5 = inlined_call_operand.vmem [shape: f32[8,1], index: 5, kind: input, shape index: {}]
  %s6 = inlined_call_operand.vmem [shape: f32[8,1], index: 6, kind: input, shape index: {}]
  %s7 = inlined_call_operand.vmem [shape: bf16[8,128], index: 7, kind: output, shape index: {}]
  %s8 = sld [smem:[#allocation0]]
  $region38: #{_lambda_.10} parent=0
    _
  %s10 = ssub.s32 1, %s8
  %s11 = scalar_select 0, %s10, %s8
  // Predicated region
  $region2: #{_lambda_.10} parent=0 // pred_check
    _
  $region3: #{_lambda_.10} parent=0 // pred_check_branch
    %13 = sbr.rel (0) target = $region5
  $region4: #{_lambda_.10} parent=0 // pred_region
    _
  $region5: #{_lambda_.10} parent=0 // pred_fallthru
    _
  // Predicated region
  $region6: #{_lambda_.10} parent=0 // pred_check
    _
  $region7: #{_lambda_.10} parent=0 // pred_check_branch
    %15 = sbr.rel (0) target = $region9
  $region8: #{_lambda_.10} parent=0 // pred_region
    _
  $region9: #{_lambda_.10} parent=0 // pred_fallthru
    _
  // Predicated region
  $region10: #{_lambda_.10} parent=0 // pred_check
    _
  $region11: #{_lambda_.10} parent=0 // pred_check_branch
    %17 = sbr.rel (0) target = $region13
  $region12: #{_lambda_.10} parent=0 // pred_region
    _
  $region13: #{_lambda_.10} parent=0 // pred_fallthru
    _
  // Predicated region
  $region14: #{_lambda_.10} parent=0 // pred_check
    _
  $region15: #{_lambda_.10} parent=0 // pred_check_branch
    %19 = sbr.rel (0) target = $region17
  $region16: #{_lambda_.10} parent=0 // pred_region
    _
  $region17: #{_lambda_.10} parent=0 // pred_fallthru
    _
  // Predicated region
  $region18: #{_lambda_.10} parent=0 // pred_check
    _
  $region19: #{_lambda_.10} parent=0 // pred_check_branch
    %21 = sbr.rel (0) target = $region21
  $region20: #{_lambda_.10} parent=0 // pred_region
    _
  $region21: #{_lambda_.10} parent=0 // pred_fallthru
    _
  // Predicated region
  $region22: #{_lambda_.10} parent=0 // pred_check
    _
  $region23: #{_lambda_.10} parent=0 // pred_check_branch
    %23 = sbr.rel (0) target = $region25
  $region24: #{_lambda_.10} parent=0 // pred_region
    _
  $region25: #{_lambda_.10} parent=0 // pred_fallthru
    _
  // Predicated region
  $region26: #{_lambda_.10} parent=0 // pred_check
    _
  $region27: #{_lambda_.10} parent=0 // pred_check_branch
    %25 = sbr.rel (0) target = $region29
  $region28: #{_lambda_.10} parent=0 // pred_region
    _
  $region29: #{_lambda_.10} parent=0 // pred_fallthru
    _
  %v27 = vld [vmem:[%s1] sm:$0xff]
  %v28 = vld [vmem:[%s0] sm:$0xf]
  %v29 = vld [vmem:[%s0 + $0x4] sm:$0xf]
  %v30 = vld [vmem:[%s0 + $0x8] sm:$0xf]
  %v31 = vld [vmem:[%s0 + $0xc] sm:$0xf]
  %v32 = vld [vmem:[%s0 + $0x10] sm:$0xf]
  %v33 = vld [vmem:[%s0 + $0x14] sm:$0xf]
  %v34 = vld [vmem:[%s0 + $0x18] sm:$0xf]
  %v35 = vld [vmem:[%s0 + $0x1c] sm:$0xf]
  %v36 = vld [vmem:[%s0 + $0x20] sm:$0xf]
  %v37 = vld [vmem:[%s0 + $0x24] sm:$0xf]
  %v38 = vld [vmem:[%s0 + $0x28] sm:$0xf]
  %v39 = vld [vmem:[%s0 + $0x2c] sm:$0xf]
  %v40 = vld [vmem:[%s0 + $0x30] sm:$0xf]
  %v41 = vld [vmem:[%s0 + $0x34] sm:$0xf]
  %v42 = vld [vmem:[%s0 + $0x38] sm:$0xf]
  %v43 = vld [vmem:[%s0 + $0x3c] sm:$0xf]
  %v44 = vld [vmem:[%s0 + $0x40] sm:$0xf]
  %v45 = vld [vmem:[%s0 + $0x44] sm:$0xf]
  %v46 = vld [vmem:[%s0 + $0x48] sm:$0xf]
  %v47 = vld [vmem:[%s0 + $0x4c] sm:$0xf]
  %v48 = vld [vmem:[%s0 + $0x50] sm:$0xf]
  %v49 = vld [vmem:[%s0 + $0x54] sm:$0xf]
  %v50 = vld [vmem:[%s0 + $0x58] sm:$0xf]
  %v51 = vld [vmem:[%s0 + $0x5c] sm:$0xf]
  %v52 = vld [vmem:[%s0 + $0x60] sm:$0xf]
  %v53 = vld [vmem:[%s0 + $0x64] sm:$0xf]
  %v54 = vld [vmem:[%s0 + $0x68] sm:$0xf]
  %v55 = vld [vmem:[%s2] sm:$0xff]
  %57 = vset.pattern.permute.xlu0 0
  %58 = vperm.xlu0 %57, %v55
  %v59 = vpop.permute.xlu0 %58
  %v62 = vunpack.c.l.b16 %v27
  %v63 = vunpack.c.h.b16 %v27
  %v64 = vpack.c.b16 %v62, %v62
  %v65 = vpack.c.b16 %v63, %v63
  %v94 = vunpack.c.l.b16 %v28
  %v95 = vunpack.c.l.b16 %v29
  %v96 = vunpack.c.l.b16 %v30
  %v97 = vunpack.c.l.b16 %v31
  %v98 = vunpack.c.l.b16 %v32
  %v99 = vunpack.c.l.b16 %v33
  %v100 = vunpack.c.l.b16 %v34
  %v101 = vunpack.c.l.b16 %v35
  %v102 = vunpack.c.l.b16 %v36
  %v103 = vunpack.c.l.b16 %v37
  %v104 = vunpack.c.l.b16 %v38
  %v105 = vunpack.c.l.b16 %v39
  %v106 = vunpack.c.l.b16 %v40
  %v107 = vunpack.c.l.b16 %v41
  %v108 = vunpack.c.l.b16 %v42
  %v109 = vunpack.c.l.b16 %v43
  %v110 = vunpack.c.l.b16 %v44
  %v111 = vunpack.c.l.b16 %v45
  %v112 = vunpack.c.l.b16 %v46
  %v113 = vunpack.c.l.b16 %v47
  %v114 = vunpack.c.l.b16 %v48
  %v115 = vunpack.c.l.b16 %v49
  %v116 = vunpack.c.l.b16 %v50
  %v117 = vunpack.c.l.b16 %v51
  %v118 = vunpack.c.l.b16 %v52
  %v119 = vunpack.c.l.b16 %v53
  %v120 = vunpack.c.l.b16 %v54
  %v121 = vpack.c.b16 %v95, %v94
  %v122 = vpack.c.b16 %v97, %v96
  %v123 = vpack.c.b16 %v99, %v98
  %v124 = vpack.c.b16 %v101, %v100
  %v125 = vpack.c.b16 %v103, %v102
  %v126 = vpack.c.b16 %v105, %v104
  %v127 = vpack.c.b16 %v107, %v106
  %v128 = vpack.c.b16 %v109, %v108
  %v129 = vpack.c.b16 %v111, %v110
  %v130 = vpack.c.b16 %v113, %v112
  %v131 = vpack.c.b16 %v115, %v114
  %v132 = vpack.c.b16 %v117, %v116
  %v133 = vpack.c.b16 %v119, %v118
  %v134 = vpack.c.b16 %v120, %v120
  %vm148 = vcmask 719872
  %v150 = vsel %vm148, %v65, 0
  %vm152 = vcmask 1043456
  %v154 = vsel %vm152, %v134, 0
  %156 = vmatpush.bf16.msra.mxu0 %v128
  %157 = vmatpush.bf16.msra.mxu0 %v127
  %158 = vmatpush.bf16.msra.mxu0 %v126
  %159 = vmatpush.bf16.msra.mxu0 %v125
  %160 = vmatpush.bf16.msra.mxu0 %v124
  %161 = vmatpush.bf16.msra.mxu0 %v123
  %162 = vmatpush.bf16.msra.mxu0 %v122
  %163 = vmatpush.bf16.msra.mxu0 %v121
  %164 = vmatmul.bf16.gmra.mxu0 %v64
  %v165 = vpop.f32.mrf.mxu0
  %v166 = vadd.f32 %v59, %v165
  %v167 = vpop.f32.mrf.mxu0
  %168 = vdwg.mxu0
  %169 = vmatpush.bf16.msra.mxu0 0
  %170 = vmatpush.bf16.msra.mxu0 0
  %171 = vmatpush.bf16.msra.mxu0 %v154
  %172 = vmatpush.bf16.msra.mxu0 %v133
  %173 = vmatpush.bf16.msra.mxu0 %v132
  %174 = vmatpush.bf16.msra.mxu0 %v131
  %175 = vmatpush.bf16.msra.mxu0 %v130
  %176 = vmatpush.bf16.msra.mxu0 %v129
  %177 = vmatmul.bf16.gmra.mxu0 %v150
  %v178 = vpop.f32.mrf.mxu0
  %v179 = vadd.f32 %v166, %v178
  %v180 = vpop.f32.mrf.mxu0
  %181 = vdwg.mxu0
  %v182 = vld [vmem:[%s6] sm:$0xff]
  %v183 = vadd.f32 %v182, 1e-05
  %v184 = vrsqrt.pop %v183
  %v185 = vmul.f32 %v184, %v183
  %v186 = vmul.f32 %v185, %v184
  %v187 = vmul.f32 0.5, %v186
  %v188 = vsub.f32 1.5, %v187
  %v189 = vmul.f32 %v184, %v188
  %vm190 = vweird.f32 %v183
  %vm191 = vweird.f32 %v184
  %vm192 = vmor %vm190, %vm191
  %v193 = vsel %vm192, %v184, %v189
  %v194 = vld [vmem:[%s5] sm:$0xff]
  %196 = vset.pattern.permute.xlu0 0
  %197 = vperm.xlu0 %196, %v194
  %v198 = vpop.permute.xlu0 %197
  %v200 = vsub.f32 %v179, %v198
  %v201 = vld [vmem:[%s3] sm:$0xff]
  %v202 = vmul.f32 %v201, %v193
  %204 = vset.pattern.permute.xlu0 0
  %205 = vperm.xlu0 %204, %v202
  %v206 = vpop.permute.xlu0 %205
  %v208 = vmul.f32 %v200, %v206
  %v209 = vld [vmem:[%s4] sm:$0xff]
  %211 = vset.pattern.permute.xlu0 0
  %212 = vperm.xlu0 %211, %v209
  %v213 = vpop.permute.xlu0 %212
  %v215 = vadd.f32 %v208, %v213
  %v216 = vmax.f32 %v215, 0.0
  %v217 = vmin.f32 %v216, 6.0
  %v218 = vpack.c.bf16 %v217, %v217
  %219 = vst [vmem:[%s7] sm:$0xf] %v218
  // Predicated region
  $region30: #{_lambda_.10} parent=0 // pred_check
    _
  $region31: #{_lambda_.10} parent=0 // pred_check_branch
    %221 = sbr.rel (0) target = $region33
  $region32: #{_lambda_.10} parent=0 // pred_region
    _
  $region33: #{_lambda_.10} parent=0 // pred_fallthru
    _
  // Predicated region
  $region34: #{_lambda_.10} parent=0 // pred_check
    _
  $region35: #{_lambda_.10} parent=0 // pred_check_branch
    %223 = sbr.rel (0) target = $region37
  $region36: #{_lambda_.10} parent=0 // pred_region
    _
  $region37: #{_lambda_.10} parent=0 // pred_fallthru
    _

</llo_original>
